<compile_context>
chip_gen: v7x
topology: tpu7x:2x2x1
jax: 0.10.0
libtpu: 0.0.40
codegen_flags: <defaults>
</compile_context>

<pallas_src>
import functools

import jax
import jax.numpy as jnp
from jax import lax
from jax.experimental import pallas as pl
from jax.experimental.pallas import tpu as pltpu

VERY_SMALL_NUMBER = 1e-12
_VMEM_SPEC = pl.BlockSpec(memory_space=pltpu.MemorySpace.VMEM)
_VMEM_LIMIT = 48 * 1024 * 1024  # fits v5e/v6e/v7x scoped VMEM comfortably


# ---------------------------------------------------------------------------
# Kernel 0: build concatenated normalized perspective features + x @ W1
# ---------------------------------------------------------------------------
def prep_kernel(x_ref, w_ref, w1_ref, feat_ref, xw1_ref, *, num_pers):
    x = x_ref[...]                         # (N, F)
    w = w_ref[...]                         # (P, F)
    f = x.shape[1]

    # All P squared norms in ONE MXU op: (x*x) @ (w*w)^T -> (N, P)
    # (contraction on the last axis of both operands, no transpose).
    nrm_sq = lax.dot_general(x * x, w * w,
                             dimension_numbers=(((1,), (1,)), ((), ())),
                             preferred_element_type=jnp.float32)
    # F.normalize eps=1e-12 on the norm -> clamp squared norm at 1e-24.
    # Fold the 1/num_pers of the mean-cosine into the per-side scale (1/sqrt(P)).
    inv_nrm = lax.rsqrt(jnp.maximum(nrm_sq, 1e-24)) * (1.0 / (num_pers ** 0.5))

    # Write each perspective's normalized features into its 32-lane column slab.
    for p in range(num_pers):
        feat_p = x * w_ref[p:p + 1, :] * inv_nrm[:, p:p + 1]      # (N, F)
        feat_ref[:, p * f:(p + 1) * f] = feat_p

    xw1_ref[...] = jnp.dot(x, w1_ref[...], preferred_element_type=jnp.float32)


# ---------------------------------------------------------------------------
# Kernel 1: row-tiled graph learner (weighted_cosine) + skip-mix + GCN hop 1
# ---------------------------------------------------------------------------
def learn_hop1_kernel(feat_ref, xw1_ref, b1_ref, init_adj_ref,
                      adj_ref, raw_ref, h1_ref,
                      *, tile_m, epsilon, graph_skip_conn):
    i = pl.program_id(0)
    row0 = pl.multiple_of(i * tile_m, tile_m)

    feat_all = feat_ref[...]                            # (N, P*F)
    feat_rows = feat_ref[pl.ds(row0, tile_m), :]        # (TM, P*F)

    # Mean weighted-cosine similarity for this row tile: single K=P*F matmul,
    # contraction on the last axis of both operands (no explicit transpose).
    att = lax.dot_general(feat_rows, feat_all,
                          dimension_numbers=(((1,), (1,)), ((), ())),
                          preferred_element_type=jnp.float32)   # (TM, N)

    # build_epsilon_neighbourhood (markoff_value = 0)
    mask = (att > epsilon).astype(jnp.float32)
    raw = att * mask
    raw_ref[...] = raw

    # weighted_cosine branch: row-normalize (reciprocal on EUP, then multiply).
    row_sum = jnp.sum(raw, axis=-1, keepdims=True)                # (TM, 1)
    inv_row = pl.reciprocal(jnp.maximum(row_sum, VERY_SMALL_NUMBER),
                            approx=True)
    adj_tile = (graph_skip_conn * init_adj_ref[...]
                + (1.0 - graph_skip_conn) * (raw * inv_row))
    adj_ref[...] = adj_tile

    # Fused GCN hop 1: relu(adj @ (x @ W1) + b1) for this row tile.
    h = jnp.dot(adj_tile, xw1_ref[...],
                preferred_element_type=jnp.float32) + b1_ref[...]
    h1_ref[...] = jnp.maximum(h, 0.0)


# ---------------------------------------------------------------------------
# Kernel 2: row-tiled GCN hop 2 + log_softmax
# ---------------------------------------------------------------------------
def hop2_logsoftmax_kernel(adj_ref, h1_ref, w2_ref, b2_ref, out_ref):
    # (h1 @ W2) is tiny; recomputing it per row tile is far cheaper than the
    # adj matmul and keeps everything in one pipelined pass over adj.
    hw2 = jnp.dot(h1_ref[...], w2_ref[...],
                  preferred_element_type=jnp.float32)             # (N, C)
    z = jnp.dot(adj_ref[...], hw2,
                preferred_element_type=jnp.float32) + b2_ref[...]  # (TM, C)

    # log_softmax over classes (last axis)
    zmax = jnp.max(z, axis=-1, keepdims=True)
    zs = z - zmax
    lse = jnp.log(jnp.sum(jnp.exp(zs), axis=-1, keepdims=True))
    out_ref[...] = zs - lse
    # TODO(synk): pad the class axis to 128 lanes for unmasked stores if the
    # real model keeps num_class this narrow.


# ---------------------------------------------------------------------------
# Wrapper (plain-JAX glue around pallas_call)
# ---------------------------------------------------------------------------
def graph_clf_forward(node_features, init_adj, params, *,
                      num_pers, epsilon, graph_skip_conn, tile_m=64):
    n, f = node_features.shape
    h_dim = params["w1"].shape[1]
    c = params["w2"].shape[1]
    k = num_pers * f
    assert n % tile_m == 0 and tile_m % 8 == 0
    n_tiles = n // tile_m

    # ---- kernel 0: prep (no grid, everything tiny) -------------------------
    prep = pl.pallas_call(
        functools.partial(prep_kernel, num_pers=num_pers),
        out_shape=(jax.ShapeDtypeStruct((n, k), jnp.float32),      # feat_cat
                   jax.ShapeDtypeStruct((n, h_dim), jnp.float32)),  # x @ W1
        in_specs=[_VMEM_SPEC, _VMEM_SPEC, _VMEM_SPEC],
        out_specs=(_VMEM_SPEC, _VMEM_SPEC),
        compiler_params=pltpu.CompilerParams(vmem_limit_bytes=_VMEM_LIMIT),
    )
    feat_cat, xw1 = prep(node_features, params["w_cos"], params["w1"])

    # ---- kernel 1: row-tiled graph learner + skip mix + hop 1 --------------
    learn_cost = pl.CostEstimate(
        flops=2 * n * n * k + 2 * n * n * h_dim + 8 * n * n,
        transcendentals=n,
        bytes_accessed=4 * (n * k + n * h_dim + h_dim + 3 * n * n + n * h_dim),
    )
    learn = pl.pallas_call(
        functools.partial(learn_hop1_kernel,
                          tile_m=tile_m,
                          epsilon=float(epsilon),
                          graph_skip_conn=float(graph_skip_conn)),
        grid=(n_tiles,),
        out_shape=(jax.ShapeDtypeStruct((n, n), jnp.float32),      # adj
                   jax.ShapeDtypeStruct((n, n), jnp.float32),      # raw_adj
                   jax.ShapeDtypeStruct((n, h_dim), jnp.float32)),  # h1
        in_specs=[
            pl.BlockSpec((n, k), lambda i: (0, 0)),                # feat_cat (resident)
            pl.BlockSpec((n, h_dim), lambda i: (0, 0)),            # xw1 (resident)
            pl.BlockSpec((1, h_dim), lambda i: (0, 0)),            # b1
            pl.BlockSpec((tile_m, n), lambda i: (i, 0)),           # init_adj row tile
        ],
        out_specs=(
            pl.BlockSpec((tile_m, n), lambda i: (i, 0)),           # adj row tile
            pl.BlockSpec((tile_m, n), lambda i: (i, 0)),           # raw row tile
            pl.BlockSpec((tile_m, h_dim), lambda i: (i, 0)),       # h1 row tile
        ),
        compiler_params=pltpu.CompilerParams(
            dimension_semantics=("parallel",),
            vmem_limit_bytes=_VMEM_LIMIT),
        cost_estimate=learn_cost,
    )
    adj, raw_adj, h1 = learn(feat_cat, xw1, params["b1"], init_adj)

    # ---- kernel 2: row-tiled hop 2 + log_softmax ---------------------------
    hop2_cost = pl.CostEstimate(
        flops=2 * n * h_dim * c * n_tiles + 2 * n * n * c + 6 * n * c,
        transcendentals=n * (c + 1),
        bytes_accessed=4 * (n * n + n * h_dim + h_dim * c + c + n * c),
    )
    hop2 = pl.pallas_call(
        hop2_logsoftmax_kernel,
        grid=(n_tiles,),
        out_shape=jax.ShapeDtypeStruct((n, c), jnp.float32),
        in_specs=[
            pl.BlockSpec((tile_m, n), lambda i: (i, 0)),           # adj row tile
            pl.BlockSpec((n, h_dim), lambda i: (0, 0)),            # h1 (resident)
            pl.BlockSpec((h_dim, c), lambda i: (0, 0)),            # w2
            pl.BlockSpec((1, c), lambda i: (0, 0)),                # b2
        ],
        out_specs=pl.BlockSpec((tile_m, c), lambda i: (i, 0)),
        compiler_params=pltpu.CompilerParams(
            dimension_semantics=("parallel",),
            vmem_limit_bytes=_VMEM_LIMIT),
        cost_estimate=hop2_cost,
    )
    output = hop2(adj, h1, params["w2"], params["b2"])
    return output, adj, raw_adj


# ---------------------------------------------------------------------------
# Helpers / reference
# ---------------------------------------------------------------------------
def normalize_adj(a):
    """Symmetric normalization D^-1/2 A D^-1/2 (IDGL's normalize_adj)."""
    rowsum = jnp.sum(a, axis=-1)
    d_inv_sqrt = jnp.where(rowsum > 0, rowsum ** -0.5, 0.0)
    return a * d_inv_sqrt[:, None] * d_inv_sqrt[None, :]


def reference_forward(x, init_adj, params, *, num_pers, epsilon, graph_skip_conn):
    """Pure-JAX reference matching GraphClf.forward (eval mode)."""
    w = params["w_cos"]
    feat = x[None, :, :] * w[:, None, :]                          # (P, N, F)
    nrm = jnp.sqrt(jnp.sum(feat * feat, axis=-1, keepdims=True))
    feat_n = feat / jnp.maximum(nrm, 1e-12)
    att = jnp.einsum('pnf,pmf->nm', feat_n, feat_n) / num_pers
    raw = att * (att > epsilon).astype(jnp.float32)
    adj = raw / jnp.maximum(jnp.sum(raw, -1, keepdims=True), VERY_SMALL_NUMBER)
    adj = graph_skip_conn * init_adj + (1.0 - graph_skip_conn) * adj
    h = jax.nn.relu(adj @ (x @ params["w1"]) + params["b1"])
    z = adj @ (h @ params["w2"]) + params["b2"]
    return jax.nn.log_softmax(z, axis=-1), adj, raw


# ---------------------------------------------------------------------------
# Deterministic parameter / input construction
# ---------------------------------------------------------------------------
if __name__ == "__main__":
    N = 256         # number of graph nodes
    NFEAT = 32      # num_feat
    HIDDEN = 32     # hidden_size
    NCLASS = 8      # num_class
    NUM_PERS = 4    # graph_learn_num_pers  (P*F = 128 = full MXU depth)
    EPSILON = 0.0   # graph_learn_epsilon
    SKIP = 0.8      # graph_skip_conn
    TILE_M = 64     # row tile -> grid of 4 (pipelined, megacore-parallel)

    key = jax.random.PRNGKey(0)
    k_x, k_adj, k_wc, k_w1, k_b1, k_w2, k_b2 = jax.random.split(key, 7)

    node_features = jax.random.normal(k_x, (N, NFEAT), jnp.float32)

    # deterministic sparse-ish symmetric initial adjacency with self loops,
    # symmetrically normalized (what IDGL feeds as init_adj)
    rand = jax.random.uniform(k_adj, (N, N))
    a = (rand > 0.9).astype(jnp.float32)
    a = jnp.maximum(a, a.T)
    a = a + jnp.eye(N, dtype=jnp.float32)
    init_adj = normalize_adj(a)

    params = {
        # GraphLearner weighted_cosine weight tensor: (num_pers, nfeat)
        "w_cos": jax.random.normal(k_wc, (NUM_PERS, NFEAT), jnp.float32),
        # GCN layer 1: (nfeat, hidden), bias (1, hidden)
        "w1": jax.random.normal(k_w1, (NFEAT, HIDDEN), jnp.float32)
              * (1.0 / jnp.sqrt(NFEAT)),
        "b1": jax.random.normal(k_b1, (1, HIDDEN), jnp.float32) * 0.01,
        # GCN layer 2: (hidden, nclass), bias (1, nclass)
        "w2": jax.random.normal(k_w2, (HIDDEN, NCLASS), jnp.float32)
              * (1.0 / jnp.sqrt(HIDDEN)),
        "b2": jax.random.normal(k_b2, (1, NCLASS), jnp.float32) * 0.01,
    }

    output, adj, raw_adj = graph_clf_forward(
        node_features, init_adj, params,
        num_pers=NUM_PERS, epsilon=EPSILON, graph_skip_conn=SKIP,
        tile_m=TILE_M)
    jax.block_until_ready((output, adj, raw_adj))

    # structural sanity checks
    assert output.shape == (N, NCLASS)
    assert adj.shape == (N, N) and raw_adj.shape == (N, N)
    probs_sum = jnp.sum(jnp.exp(output), axis=-1)
    assert bool(jnp.all(jnp.abs(probs_sum - 1.0) < 1e-4))
    assert bool(jnp.all(raw_adj >= 0.0))

    # compare against pure-JAX reference (loose tolerance: MXU default
    # precision + approx EUP reciprocal vs XLA fp32 path)
    out_ref, adj_ref, raw_ref = reference_forward(
        node_features, init_adj, params,
        num_pers=NUM_PERS, epsilon=EPSILON, graph_skip_conn=SKIP)
    assert float(jnp.max(jnp.abs(raw_adj - raw_ref))) < 3e-2
    assert float(jnp.max(jnp.abs(adj - adj_ref))) < 3e-2
    assert float(jnp.max(jnp.abs(jnp.exp(output) - jnp.exp(out_ref)))) < 3e-2

    print("KERNEL_OK")
</pallas_src>

<mosaic_0001>
module attributes {stable_mosaic.version = 11 : i64} {
  func.func @prep_kernel(%arg0: memref<256x32xf32, #tpu.memory_space<vmem>>, %arg1: memref<4x32xf32, #tpu.memory_space<vmem>>, %arg2: memref<32x32xf32, #tpu.memory_space<vmem>>, %arg3: memref<256x128xf32, #tpu.memory_space<vmem>>, %arg4: memref<256x32xf32, #tpu.memory_space<vmem>>) attributes {dimension_semantics = [], scalar_prefetch = 0 : i64, scratch_operands = 0 : i64, tpu.core_type = #tpu.core_type<tc>} {
    %c0 = arith.constant 0 : index
    %c0_0 = arith.constant 0 : index
    %0 = vector.load %arg0[%c0, %c0_0] : memref<256x32xf32, #tpu.memory_space<vmem>>, vector<256x32xf32>
    %c0_1 = arith.constant 0 : index
    %c0_2 = arith.constant 0 : index
    %1 = vector.load %arg1[%c0_1, %c0_2] : memref<4x32xf32, #tpu.memory_space<vmem>>, vector<4x32xf32>
    %2 = arith.mulf %0, %0 : vector<256x32xf32>
    %3 = arith.mulf %1, %1 : vector<4x32xf32>
    %cst = arith.constant dense<0.000000e+00> : vector<256x4xf32>
    %4 = tpu.matmul %2, %3, %cst {dimension_numbers = #tpu.dot_dimension_numbers<[1], [1], [0], [0], [0, 0, 1, 0], [], []>} : vector<256x32xf32>, vector<4x32xf32>, vector<256x4xf32> -> vector<256x4xf32>
    %cst_3 = arith.constant 1.000000e-24 : f32
    %5 = vector.broadcast %cst_3 : f32 to vector<256x4xf32>
    %6 = arith.maximumf %4, %5 : vector<256x4xf32>
    %7 = math.rsqrt %6 : vector<256x4xf32>
    %cst_4 = arith.constant 5.000000e-01 : f32
    %8 = vector.broadcast %cst_4 : f32 to vector<256x4xf32>
    %9 = arith.mulf %7, %8 : vector<256x4xf32>
    %c0_5 = arith.constant 0 : index
    %c0_6 = arith.constant 0 : index
    %10 = vector.load %arg1[%c0_5, %c0_6] : memref<4x32xf32, #tpu.memory_space<vmem>>, vector<1x32xf32>
    %11 = vector.broadcast %10 : vector<1x32xf32> to vector<256x32xf32>
    %12 = arith.mulf %0, %11 : vector<256x32xf32>
    %13 = vector.extract_strided_slice %9 {offsets = [0, 0], sizes = [256, 1], strides = [1, 1]} : vector<256x4xf32> to vector<256x1xf32>
    %14 = vector.broadcast %13 : vector<256x1xf32> to vector<256x32xf32>
    %15 = arith.mulf %12, %14 : vector<256x32xf32>
    %c0_7 = arith.constant 0 : index
    %c0_8 = arith.constant 0 : index
    %16 = vector.load %arg3[%c0_7, %c0_8] : memref<256x128xf32, #tpu.memory_space<vmem>>, vector<256x32xf32>
    tpu.vector_store %arg3[%c0_7, %c0_8], %15 {strides = array<i32>} : memref<256x128xf32, #tpu.memory_space<vmem>>, vector<256x32xf32>,
    %c1 = arith.constant 1 : index
    %c0_9 = arith.constant 0 : index
    %17 = vector.load %arg1[%c1, %c0_9] : memref<4x32xf32, #tpu.memory_space<vmem>>, vector<1x32xf32>
    %18 = vector.broadcast %17 : vector<1x32xf32> to vector<256x32xf32>
    %19 = arith.mulf %0, %18 : vector<256x32xf32>
    %20 = vector.extract_strided_slice %9 {offsets = [0, 1], sizes = [256, 1], strides = [1, 1]} : vector<256x4xf32> to vector<256x1xf32>
    %21 = vector.broadcast %20 : vector<256x1xf32> to vector<256x32xf32>
    %22 = arith.mulf %19, %21 : vector<256x32xf32>
    %c0_10 = arith.constant 0 : index
    %c32 = arith.constant 32 : index
    %23 = vector.load %arg3[%c0_10, %c32] : memref<256x128xf32, #tpu.memory_space<vmem>>, vector<256x32xf32>
    tpu.vector_store %arg3[%c0_10, %c32], %22 {strides = array<i32>} : memref<256x128xf32, #tpu.memory_space<vmem>>, vector<256x32xf32>,
    %c2 = arith.constant 2 : index
    %c0_11 = arith.constant 0 : index
    %24 = vector.load %arg1[%c2, %c0_11] : memref<4x32xf32, #tpu.memory_space<vmem>>, vector<1x32xf32>
    %25 = vector.broadcast %24 : vector<1x32xf32> to vector<256x32xf32>
    %26 = arith.mulf %0, %25 : vector<256x32xf32>
    %27 = vector.extract_strided_slice %9 {offsets = [0, 2], sizes = [256, 1], strides = [1, 1]} : vector<256x4xf32> to vector<256x1xf32>
    %28 = vector.broadcast %27 : vector<256x1xf32> to vector<256x32xf32>
    %29 = arith.mulf %26, %28 : vector<256x32xf32>
    %c0_12 = arith.constant 0 : index
    %c64 = arith.constant 64 : index
    %30 = vector.load %arg3[%c0_12, %c64] : memref<256x128xf32, #tpu.memory_space<vmem>>, vector<256x32xf32>
    tpu.vector_store %arg3[%c0_12, %c64], %29 {strides = array<i32>} : memref<256x128xf32, #tpu.memory_space<vmem>>, vector<256x32xf32>,
    %c3 = arith.constant 3 : index
    %c0_13 = arith.constant 0 : index
    %31 = vector.load %arg1[%c3, %c0_13] : memref<4x32xf32, #tpu.memory_space<vmem>>, vector<1x32xf32>
    %32 = vector.broadcast %31 : vector<1x32xf32> to vector<256x32xf32>
    %33 = arith.mulf %0, %32 : vector<256x32xf32>
    %34 = vector.extract_strided_slice %9 {offsets = [0, 3], sizes = [256, 1], strides = [1, 1]} : vector<256x4xf32> to vector<256x1xf32>
    %35 = vector.broadcast %34 : vector<256x1xf32> to vector<256x32xf32>
    %36 = arith.mulf %33, %35 : vector<256x32xf32>
    %c0_14 = arith.constant 0 : index
    %c96 = arith.constant 96 : index
    %37 = vector.load %arg3[%c0_14, %c96] : memref<256x128xf32, #tpu.memory_space<vmem>>, vector<256x32xf32>
    tpu.vector_store %arg3[%c0_14, %c96], %36 {strides = array<i32>} : memref<256x128xf32, #tpu.memory_space<vmem>>, vector<256x32xf32>,
    %c0_15 = arith.constant 0 : index
    %c0_16 = arith.constant 0 : index
    %38 = vector.load %arg2[%c0_15, %c0_16] : memref<32x32xf32, #tpu.memory_space<vmem>>, vector<32x32xf32>
    %cst_17 = arith.constant dense<0.000000e+00> : vector<256x32xf32>
    %39 = tpu.matmul %0, %38, %cst_17 {dimension_numbers = #tpu.dot_dimension_numbers<[1], [0], [0], [1], [0, 0, 1, 1], [], []>} : vector<256x32xf32>, vector<32x32xf32>, vector<256x32xf32> -> vector<256x32xf32>
    %c0_18 = arith.constant 0 : index
    %c0_19 = arith.constant 0 : index
    %40 = vector.load %arg4[%c0_18, %c0_19] : memref<256x32xf32, #tpu.memory_space<vmem>>, vector<256x32xf32>
    tpu.vector_store %arg4[%c0_18, %c0_19], %39 {strides = array<i32>} : memref<256x32xf32, #tpu.memory_space<vmem>>, vector<256x32xf32>,
    return
  }
}

</mosaic_0001>

<llo_original>
// kernel: tpu_custom_call.1
$region0: #{tpu_custom_call.1}
  #allocation0 [shape = 'u32[]', space=smem, size = 0x4, offset = 0x4, fixed_abs, tag = 'smem constant byte address 0x4 - core index']
  #allocation1 [shape = 'u32[144,128]{1,0:T(1,128)}', space=vmem, size = 0x12000, scoped, tag = 'internal scratch']
  %s0 = inlined_call_operand.vmem [shape: f32[256,32], index: 0, kind: input, shape index: {}]
  %s1 = inlined_call_operand.vmem [shape: f32[4,32], index: 1, kind: input, shape index: {}]
  %s2 = inlined_call_operand.vmem [shape: f32[32,32], index: 2, kind: input, shape index: {}]
  %s3 = inlined_call_operand.hbm [shape: f32[256,128], index: 3, kind: output, shape index: {0}]
  %s4 = inlined_call_operand.vmem [shape: f32[256,32], index: 4, kind: output, shape index: {1}]
  %5 = xla_tuple %s3, %s4
  %s6 = sld [smem:[#allocation0]]
  $region30: #{tpu_custom_call.1} parent=0
    _
  %s8 = ssub.s32 1, %s6
  %s9 = scalar_select 0, %s8, %s6
  $region1: #{tpu_custom_call.1} parent=0
    #allocation2 [shape = 'u8[131072]{0}', space=vmem, size = 0x20000, scoped, tag = 'output window, operand 0, single buffered']
    #allocation3 [shape = 's32[1]{0}', space=sflag, size = 0x4, scoped, tag = 'scoped memory for tpu_custom_call.1']
    %10 = vsyncpa [#allocation3], 0
    // Predicated region
    $region2: #{tpu_custom_call.1} parent=1 // pred_check
      _
    $region3: #{tpu_custom_call.1} parent=1 // pred_check_branch
      %12 = sbr.rel (0) target = $region5
    $region4: #{tpu_custom_call.1} parent=1 // pred_region
      _
    $region5: #{tpu_custom_call.1} parent=1 // pred_fallthru
      _
    // Predicated region
    $region6: #{tpu_custom_call.1} parent=1 // pred_check
      _
    $region7: #{tpu_custom_call.1} parent=1 // pred_check_branch
      %14 = sbr.rel (0) target = $region9
    $region8: #{tpu_custom_call.1} parent=1 // pred_region
      _
    $region9: #{tpu_custom_call.1} parent=1 // pred_fallthru
      _
    // Predicated region
    $region10: #{tpu_custom_call.1} parent=1 // pred_check
      _
    $region11: #{tpu_custom_call.1} parent=1 // pred_check_branch
      %16 = sbr.rel (0) target = $region13
    $region12: #{tpu_custom_call.1} parent=1 // pred_region
      _
    $region13: #{tpu_custom_call.1} parent=1 // pred_fallthru
      _
    %v17 = vld [vmem:[%s0] sm:$0xff]
    %v18 = vld [vmem:[%s0 + $0x8] sm:$0xff]
    %v19 = vld [vmem:[%s0 + $0x10] sm:$0xff]
    %v20 = vld [vmem:[%s0 + $0x18] sm:$0xff]
    %v21 = vld [vmem:[%s0 + $0x20] sm:$0xff]
    %v22 = vld [vmem:[%s0 + $0x28] sm:$0xff]
    %v23 = vld [vmem:[%s0 + $0x30] sm:$0xff]
    %v24 = vld [vmem:[%s0 + $0x38] sm:$0xff]
    %v25 = vld [vmem:[%s0 + $0x40] sm:$0xff]
    %v26 = vld [vmem:[%s0 + $0x48] sm:$0xff]
    %v27 = vld [vmem:[%s0 + $0x50] sm:$0xff]
    %v28 = vld [vmem:[%s0 + $0x58] sm:$0xff]
    %v29 = vld [vmem:[%s0 + $0x60] sm:$0xff]
    %v30 = vld [vmem:[%s0 + $0x68] sm:$0xff]
    %v31 = vld [vmem:[%s0 + $0x70] sm:$0xff]
    %v32 = vld [vmem:[%s0 + $0x78] sm:$0xff]
    %v33 = vld [vmem:[%s0 + $0x80] sm:$0xff]
    %v34 = vld [vmem:[%s0 + $0x88] sm:$0xff]
    %v35 = vld [vmem:[%s0 + $0x90] sm:$0xff]
    %v36 = vld [vmem:[%s0 + $0x98] sm:$0xff]
    %v37 = vld [vmem:[%s0 + $0xa0] sm:$0xff]
    %v38 = vld [vmem:[%s0 + $0xa8] sm:$0xff]
    %v39 = vld [vmem:[%s0 + $0xb0] sm:$0xff]
    %v40 = vld [vmem:[%s0 + $0xb8] sm:$0xff]
    %v41 = vld [vmem:[%s0 + $0xc0] sm:$0xff]
    %v42 = vld [vmem:[%s0 + $0xc8] sm:$0xff]
    %v43 = vld [vmem:[%s0 + $0xd0] sm:$0xff]
    %v44 = vld [vmem:[%s0 + $0xd8] sm:$0xff]
    %v45 = vld [vmem:[%s0 + $0xe0] sm:$0xff]
    %v46 = vld [vmem:[%s0 + $0xe8] sm:$0xff]
    %v47 = vld [vmem:[%s0 + $0xf0] sm:$0xff]
    %v48 = vld [vmem:[%s0 + $0xf8] sm:$0xff]
    %v49 = vld [vmem:[%s1] sm:$0xf]
    %v50 = vmul.f32 %v17, %v17
    %v51 = vmul.f32 %v18, %v18
    %v52 = vmul.f32 %v19, %v19
    %v53 = vmul.f32 %v20, %v20
    %v54 = vmul.f32 %v21, %v21
    %v55 = vmul.f32 %v22, %v22
    %v56 = vmul.f32 %v23, %v23
    %v57 = vmul.f32 %v24, %v24
    %v58 = vmul.f32 %v25, %v25
    %v59 = vmul.f32 %v26, %v26
    %v60 = vmul.f32 %v27, %v27
    %v61 = vmul.f32 %v28, %v28
    %v62 = vmul.f32 %v29, %v29
    %v63 = vmul.f32 %v30, %v30
    %v64 = vmul.f32 %v31, %v31
    %v65 = vmul.f32 %v32, %v32
    %v66 = vmul.f32 %v33, %v33
    %v67 = vmul.f32 %v34, %v34
    %v68 = vmul.f32 %v35, %v35
    %v69 = vmul.f32 %v36, %v36
    %v70 = vmul.f32 %v37, %v37
    %v71 = vmul.f32 %v38, %v38
    %v72 = vmul.f32 %v39, %v39
    %v73 = vmul.f32 %v40, %v40
    %v74 = vmul.f32 %v41, %v41
    %v75 = vmul.f32 %v42, %v42
    %v76 = vmul.f32 %v43, %v43
    %v77 = vmul.f32 %v44, %v44
    %v78 = vmul.f32 %v45, %v45
    %v79 = vmul.f32 %v46, %v46
    %v80 = vmul.f32 %v47, %v47
    %v81 = vmul.f32 %v48, %v48
    %v82 = vmul.f32 %v49, %v49
    %vm83 = vcmask 261120
    %v85 = vsel %vm83, %v50, 0
    %v88 = vsel %vm83, %v51, 0
    %v91 = vsel %vm83, %v52, 0
    %v94 = vsel %vm83, %v53, 0
    %v97 = vsel %vm83, %v54, 0
    %v100 = vsel %vm83, %v55, 0
    %v103 = vsel %vm83, %v56, 0
    %v106 = vsel %vm83, %v57, 0
    %v109 = vsel %vm83, %v58, 0
    %v112 = vsel %vm83, %v59, 0
    %v115 = vsel %vm83, %v60, 0
    %v118 = vsel %vm83, %v61, 0
    %v121 = vsel %vm83, %v62, 0
    %v124 = vsel %vm83, %v63, 0
    %v127 = vsel %vm83, %v64, 0
    %v130 = vsel %vm83, %v65, 0
    %v133 = vsel %vm83, %v66, 0
    %v136 = vsel %vm83, %v67, 0
    %v139 = vsel %vm83, %v68, 0
    %v142 = vsel %vm83, %v69, 0
    %v145 = vsel %vm83, %v70, 0
    %v148 = vsel %vm83, %v71, 0
    %v151 = vsel %vm83, %v72, 0
    %v154 = vsel %vm83, %v73, 0
    %v157 = vsel %vm83, %v74, 0
    %v160 = vsel %vm83, %v75, 0
    %v163 = vsel %vm83, %v76, 0
    %v166 = vsel %vm83, %v77, 0
    %v169 = vsel %vm83, %v78, 0
    %v172 = vsel %vm83, %v79, 0
    %v175 = vsel %vm83, %v80, 0
    %v178 = vsel %vm83, %v81, 0
    %v181 = vsel %vm83, %v82, 0
    %183 = vmatprep.subr.mxu0 0.0
    %184 = vmatpush1.xpose.msra.mxu0 %v181
    %185 = vmatprep.subr.mxu0 0.0
    %186 = vmatpush1.xpose.msra.mxu0 0.0
    %187 = vmatprep.subr.mxu0 0.0
    %188 = vmatpush1.xpose.msra.mxu0 0.0
    %189 = vmatprep.subr.mxu0 0.0
    %190 = vmatpush1.xpose.msra.mxu0 0.0
    %191 = vmatprep.subr.mxu0 0.0
    %192 = vmatpush1.xpose.msra.mxu0 0.0
    %193 = vmatprep.subr.mxu0 0.0
    %194 = vmatpush1.xpose.msra.mxu0 0.0
    %195 = vmatprep.subr.mxu0 0.0
    %196 = vmatpush1.xpose.msra.mxu0 0.0
    %197 = vmatprep.subr.mxu0 0.0
    %198 = vmatpush1.xpose.msra.mxu0 0.0
    %199 = vmatprep.subr.mxu0 0.0
    %200 = vmatpush1.xpose.msra.mxu0 0.0
    %201 = vmatprep.subr.mxu0 0.0
    %202 = vmatpush1.xpose.msra.mxu0 0.0
    %203 = vmatprep.subr.mxu0 0.0
    %204 = vmatpush1.xpose.msra.mxu0 0.0
    %205 = vmatprep.subr.mxu0 0.0
    %206 = vmatpush1.xpose.msra.mxu0 0.0
    %207 = vmatprep.subr.mxu0 0.0
    %208 = vmatpush1.xpose.msra.mxu0 0.0
    %209 = vmatprep.subr.mxu0 0.0
    %210 = vmatpush1.xpose.msra.mxu0 0.0
    %211 = vmatprep.subr.mxu0 0.0
    %212 = vmatpush1.xpose.msra.mxu0 0.0
    %213 = vmatprep.subr.mxu0 0.0
    %214 = vmatpush1.xpose.msra.mxu0 0.0
    %215 = vmatprep.subr.mxu0 0.0
    %216 = vmatpush1.xpose.msra.mxu0 0.0
    %217 = vmatprep.subr.mxu0 0.0
    %218 = vmatpush1.xpose.msra.mxu0 0.0
    %219 = vmatprep.subr.mxu0 0.0
    %220 = vmatpush1.xpose.msra.mxu0 0.0
    %221 = vmatprep.subr.mxu0 0.0
    %222 = vmatpush1.xpose.msra.mxu0 0.0
    %223 = vmatprep.subr.mxu0 0.0
    %224 = vmatpush1.xpose.msra.mxu0 0.0
    %225 = vmatprep.subr.mxu0 0.0
    %226 = vmatpush1.xpose.msra.mxu0 0.0
    %227 = vmatprep.subr.mxu0 0.0
    %228 = vmatpush1.xpose.msra.mxu0 0.0
    %229 = vmatprep.subr.mxu0 0.0
    %230 = vmatpush1.xpose.msra.mxu0 0.0
    %231 = vmatprep.subr.mxu0 0.0
    %232 = vmatpush1.xpose.msra.mxu0 0.0
    %233 = vmatprep.subr.mxu0 0.0
    %234 = vmatpush1.xpose.msra.mxu0 0.0
    %235 = vmatprep.subr.mxu0 0.0
    %236 = vmatpush1.xpose.msra.mxu0 0.0
    %237 = vmatprep.subr.mxu0 0.0
    %238 = vmatpush1.xpose.msra.mxu0 0.0
    %239 = vmatprep.subr.mxu0 0.0
    %240 = vmatpush1.xpose.msra.mxu0 0.0
    %241 = vmatprep.subr.mxu0 0.0
    %242 = vmatpush1.xpose.msra.mxu0 0.0
    %243 = vmatprep.subr.mxu0 0.0
    %244 = vmatpush1.xpose.msra.mxu0 0.0
    %245 = vmatprep.subr.mxu0 0.0
    %246 = vmatpush1.xpose.msra.mxu0 0.0
    %247 = vmatprep.mubr.f32.mxu0 0.0
    %248 = vmatmul.mubr.f32.gmra.mrb[0].mxu0 %v85
    %v249 = vpop.f32.mrb[0].mxu0
    %v250 = vadd.f32 0.0, %v249
    %v251 = vpop.f32.mrb[0].mxu0
    %252 = vmatprep.mubr.f32.mxu0 0.0
    %253 = vmatmul.mubr.f32.gmra.mrb[0].mxu0 %v88
    %v254 = vpop.f32.mrb[0].mxu0
    %v255 = vadd.f32 0.0, %v254
    %v256 = vpop.f32.mrb[0].mxu0
    %257 = vmatprep.mubr.f32.mxu0 0.0
    %258 = vmatmul.mubr.f32.gmra.mrb[0].mxu0 %v91
    %v259 = vpop.f32.mrb[0].mxu0
    %v260 = vadd.f32 0.0, %v259
    %v261 = vpop.f32.mrb[0].mxu0
    %262 = vmatprep.mubr.f32.mxu0 0.0
    %263 = vmatmul.mubr.f32.gmra.mrb[0].mxu0 %v94
    %v264 = vpop.f32.mrb[0].mxu0
    %v265 = vadd.f32 0.0, %v264
    %v266 = vpop.f32.mrb[0].mxu0
    %267 = vmatprep.mubr.f32.mxu0 0.0
    %268 = vmatmul.mubr.f32.gmra.mrb[0].mxu0 %v97
    %v269 = vpop.f32.mrb[0].mxu0
    %v270 = vadd.f32 0.0, %v269
    %v271 = vpop.f32.mrb[0].mxu0
    %272 = vmatprep.mubr.f32.mxu0 0.0
    %273 = vmatmul.mubr.f32.gmra.mrb[0].mxu0 %v100
    %v274 = vpop.f32.mrb[0].mxu0
    %v275 = vadd.f32 0.0, %v274
    %v276 = vpop.f32.mrb[0].mxu0
    %277 = vmatprep.mubr.f32.mxu0 0.0
    %278 = vmatmul.mubr.f32.gmra.mrb[0].mxu0 %v103
    %v279 = vpop.f32.mrb[0].mxu0
    %v280 = vadd.f32 0.0, %v279
    %v281 = vpop.f32.mrb[0].mxu0
    %282 = vmatprep.mubr.f32.mxu0 0.0
    %283 = vmatmul.mubr.f32.gmra.mrb[0].mxu0 %v106
    %v284 = vpop.f32.mrb[0].mxu0
    %v285 = vadd.f32 0.0, %v284
    %v286 = vpop.f32.mrb[0].mxu0
    %287 = vmatprep.mubr.f32.mxu0 0.0
    %288 = vmatmul.mubr.f32.gmra.mrb[0].mxu0 %v109
    %v289 = vpop.f32.mrb[0].mxu0
    %v290 = vadd.f32 0.0, %v289
    %v291 = vpop.f32.mrb[0].mxu0
    %292 = vmatprep.mubr.f32.mxu0 0.0
    %293 = vmatmul.mubr.f32.gmra.mrb[0].mxu0 %v112
    %v294 = vpop.f32.mrb[0].mxu0
    %v295 = vadd.f32 0.0, %v294
    %v296 = vpop.f32.mrb[0].mxu0
    %297 = vmatprep.mubr.f32.mxu0 0.0
    %298 = vmatmul.mubr.f32.gmra.mrb[0].mxu0 %v115
    %v299 = vpop.f32.mrb[0].mxu0
    %v300 = vadd.f32 0.0, %v299
    %v301 = vpop.f32.mrb[0].mxu0
    %302 = vmatprep.mubr.f32.mxu0 0.0
    %303 = vmatmul.mubr.f32.gmra.mrb[0].mxu0 %v118
    %v304 = vpop.f32.mrb[0].mxu0
    %v305 = vadd.f32 0.0, %v304
    %v306 = vpop.f32.mrb[0].mxu0
    %307 = vmatprep.mubr.f32.mxu0 0.0
    %308 = vmatmul.mubr.f32.gmra.mrb[0].mxu0 %v121
    %v309 = vpop.f32.mrb[0].mxu0
    %v310 = vadd.f32 0.0, %v309
    %v311 = vpop.f32.mrb[0].mxu0
    %312 = vmatprep.mubr.f32.mxu0 0.0
    %313 = vmatmul.mubr.f32.gmra.mrb[0].mxu0 %v124
    %v314 = vpop.f32.mrb[0].mxu0
    %v315 = vadd.f32 0.0, %v314
    %v316 = vpop.f32.mrb[0].mxu0
    %317 = vmatprep.mubr.f32.mxu0 0.0
    %318 = vmatmul.mubr.f32.gmra.mrb[0].mxu0 %v127
    %v319 = vpop.f32.mrb[0].mxu0
    %v320 = vadd.f32 0.0, %v319
    %v321 = vpop.f32.mrb[0].mxu0
    %322 = vmatprep.mubr.f32.mxu0 0.0
    %323 = vmatmul.mubr.f32.gmra.mrb[0].mxu0 %v130
    %v324 = vpop.f32.mrb[0].mxu0
    %v325 = vadd.f32 0.0, %v324
    %v326 = vpop.f32.mrb[0].mxu0
    %327 = vmatprep.mubr.f32.mxu0 0.0
    %328 = vmatmul.mubr.f32.gmra.mrb[0].mxu0 %v133
    %v329 = vpop.f32.mrb[0].mxu0
    %v330 = vadd.f32 0.0, %v329
    %v331 = vpop.f32.mrb[0].mxu0
    %332 = vmatprep.mubr.f32.mxu0 0.0
    %333 = vmatmul.mubr.f32.gmra.mrb[0].mxu0 %v136
    %v334 = vpop.f32.mrb[0].mxu0
    %v335 = vadd.f32 0.0, %v334
    %v336 = vpop.f32.mrb[0].mxu0
    %337 = vmatprep.mubr.f32.mxu0 0.0
    %338 = vmatmul.mubr.f32.gmra.mrb[0].mxu0 %v139
    %v339 = vpop.f32.mrb[0].mxu0
    %v340 = vadd.f32 0.0, %v339
    %v341 = vpop.f32.mrb[0].mxu0
    %342 = vmatprep.mubr.f32.mxu0 0.0
    %343 = vmatmul.mubr.f32.gmra.mrb[0].mxu0 %v142
    %v344 = vpop.f32.mrb[0].mxu0
    %v345 = vadd.f32 0.0, %v344
    %v346 = vpop.f32.mrb[0].mxu0
    %347 = vmatprep.mubr.f32.mxu0 0.0
    %348 = vmatmul.mubr.f32.gmra.mrb[0].mxu0 %v145
    %v349 = vpop.f32.mrb[0].mxu0
    %v350 = vadd.f32 0.0, %v349
    %v351 = vpop.f32.mrb[0].mxu0
    %352 = vmatprep.mubr.f32.mxu0 0.0
    %353 = vmatmul.mubr.f32.gmra.mrb[0].mxu0 %v148
    %v354 = vpop.f32.mrb[0].mxu0
    %v355 = vadd.f32 0.0, %v354
    %v356 = vpop.f32.mrb[0].mxu0
    %357 = vmatprep.mubr.f32.mxu0 0.0
    %358 = vmatmul.mubr.f32.gmra.mrb[0].mxu0 %v151
    %v359 = vpop.f32.mrb[0].mxu0
    %v360 = vadd.f32 0.0, %v359
    %v361 = vpop.f32.mrb[0].mxu0
    %362 = vmatprep.mubr.f32.mxu0 0.0
    %363 = vmatmul.mubr.f32.gmra.mrb[0].mxu0 %v154
    %v364 = vpop.f32.mrb[0].mxu0
    %v365 = vadd.f32 0.0, %v364
    %v366 = vpop.f32.mrb[0].mxu0
    %367 = vmatprep.mubr.f32.mxu0 0.0
    %368 = vmatmul.mubr.f32.gmra.mrb[0].mxu0 %v157
    %v369 = vpop.f32.mrb[0].mxu0
    %v370 = vadd.f32 0.0, %v369
    %v371 = vpop.f32.mrb[0].mxu0
    %372 = vmatprep.mubr.f32.mxu0 0.0
    %373 = vmatmul.mubr.f32.gmra.mrb[0].mxu0 %v160
    %v374 = vpop.f32.mrb[0].mxu0
    %v375 = vadd.f32 0.0, %v374
    %v376 = vpop.f32.mrb[0].mxu0
    %377 = vmatprep.mubr.f32.mxu0 0.0
    %378 = vmatmul.mubr.f32.gmra.mrb[0].mxu0 %v163
    %v379 = vpop.f32.mrb[0].mxu0
    %v380 = vadd.f32 0.0, %v379
    %v381 = vpop.f32.mrb[0].mxu0
    %382 = vmatprep.mubr.f32.mxu0 0.0
    %383 = vmatmul.mubr.f32.gmra.mrb[0].mxu0 %v166
    %v384 = vpop.f32.mrb[0].mxu0
    %v385 = vadd.f32 0.0, %v384
    %v386 = vpop.f32.mrb[0].mxu0
    %387 = vmatprep.mubr.f32.mxu0 0.0
    %388 = vmatmul.mubr.f32.gmra.mrb[0].mxu0 %v169
    %v389 = vpop.f32.mrb[0].mxu0
    %v390 = vadd.f32 0.0, %v389
    %v391 = vpop.f32.mrb[0].mxu0
    %392 = vmatprep.mubr.f32.mxu0 0.0
    %393 = vmatmul.mubr.f32.gmra.mrb[0].mxu0 %v172
    %v394 = vpop.f32.mrb[0].mxu0
    %v395 = vadd.f32 0.0, %v394
    %v396 = vpop.f32.mrb[0].mxu0
    %397 = vmatprep.mubr.f32.mxu0 0.0
    %398 = vmatmul.mubr.f32.gmra.mrb[0].mxu0 %v175
    %v399 = vpop.f32.mrb[0].mxu0
    %v400 = vadd.f32 0.0, %v399
    %v401 = vpop.f32.mrb[0].mxu0
    %402 = vmatprep.mubr.f32.mxu0 0.0
    %403 = vmatmul.mubr.f32.gmra.mrb[0].mxu0 %v178
    %v404 = vpop.f32.mrb[0].mxu0
    %v405 = vadd.f32 0.0, %v404
    %v406 = vpop.f32.mrb[0].mxu0
    %407 = vdwg.mxu0
    %v408 = vmax.f32 %v250, 1e-24
    %v409 = vmax.f32 %v255, 1e-24
    %v410 = vmax.f32 %v260, 1e-24
    %v411 = vmax.f32 %v265, 1e-24
    %v412 = vmax.f32 %v270, 1e-24
    %v413 = vmax.f32 %v275, 1e-24
    %v414 = vmax.f32 %v280, 1e-24
    %v415 = vmax.f32 %v285, 1e-24
    %v416 = vmax.f32 %v290, 1e-24
    %v417 = vmax.f32 %v295, 1e-24
    %v418 = vmax.f32 %v300, 1e-24
    %v419 = vmax.f32 %v305, 1e-24
    %v420 = vmax.f32 %v310, 1e-24
    %v421 = vmax.f32 %v315, 1e-24
    %v422 = vmax.f32 %v320, 1e-24
    %v423 = vmax.f32 %v325, 1e-24
    %v424 = vmax.f32 %v330, 1e-24
    %v425 = vmax.f32 %v335, 1e-24
    %v426 = vmax.f32 %v340, 1e-24
    %v427 = vmax.f32 %v345, 1e-24
    %v428 = vmax.f32 %v350, 1e-24
    %v429 = vmax.f32 %v355, 1e-24
    %v430 = vmax.f32 %v360, 1e-24
    %v431 = vmax.f32 %v365, 1e-24
    %v432 = vmax.f32 %v370, 1e-24
    %v433 = vmax.f32 %v375, 1e-24
    %v434 = vmax.f32 %v380, 1e-24
    %v435 = vmax.f32 %v385, 1e-24
    %v436 = vmax.f32 %v390, 1e-24
    %v437 = vmax.f32 %v395, 1e-24
    %v438 = vmax.f32 %v400, 1e-24
    %v439 = vmax.f32 %v405, 1e-24
    %v440 = vrsqrt.pop %v408
    %v441 = vrsqrt.pop %v409
    %v442 = vrsqrt.pop %v410
    %v443 = vrsqrt.pop %v411
    %v444 = vrsqrt.pop %v412
    %v445 = vrsqrt.pop %v413
    %v446 = vrsqrt.pop %v414
    %v447 = vrsqrt.pop %v415
    %v448 = vrsqrt.pop %v416
    %v449 = vrsqrt.pop %v417
    %v450 = vrsqrt.pop %v418
    %v451 = vrsqrt.pop %v419
    %v452 = vrsqrt.pop %v420
    %v453 = vrsqrt.pop %v421
    %v454 = vrsqrt.pop %v422
    %v455 = vrsqrt.pop %v423
    %v456 = vrsqrt.pop %v424
    %v457 = vrsqrt.pop %v425
    %v458 = vrsqrt.pop %v426
    %v459 = vrsqrt.pop %v427
    %v460 = vrsqrt.pop %v428
    %v461 = vrsqrt.pop %v429
    %v462 = vrsqrt.pop %v430
    %v463 = vrsqrt.pop %v431
    %v464 = vrsqrt.pop %v432
    %v465 = vrsqrt.pop %v433
    %v466 = vrsqrt.pop %v434
    %v467 = vrsqrt.pop %v435
    %v468 = vrsqrt.pop %v436
    %v469 = vrsqrt.pop %v437
    %v470 = vrsqrt.pop %v438
    %v471 = vrsqrt.pop %v439
    %v472 = vmul.f32 %v440, 0.5
    %v473 = vmul.f32 %v441, 0.5
    %v474 = vmul.f32 %v442, 0.5
    %v475 = vmul.f32 %v443, 0.5
    %v476 = vmul.f32 %v444, 0.5
    %v477 = vmul.f32 %v445, 0.5
    %v478 = vmul.f32 %v446, 0.5
    %v479 = vmul.f32 %v447, 0.5
    %v480 = vmul.f32 %v448, 0.5
    %v481 = vmul.f32 %v449, 0.5
    %v482 = vmul.f32 %v450, 0.5
    %v483 = vmul.f32 %v451, 0.5
    %v484 = vmul.f32 %v452, 0.5
    %v485 = vmul.f32 %v453, 0.5
    %v486 = vmul.f32 %v454, 0.5
    %v487 = vmul.f32 %v455, 0.5
    %v488 = vmul.f32 %v456, 0.5
    %v489 = vmul.f32 %v457, 0.5
    %v490 = vmul.f32 %v458, 0.5
    %v491 = vmul.f32 %v459, 0.5
    %v492 = vmul.f32 %v460, 0.5
    %v493 = vmul.f32 %v461, 0.5
    %v494 = vmul.f32 %v462, 0.5
    %v495 = vmul.f32 %v463, 0.5
    %v496 = vmul.f32 %v464, 0.5
    %v497 = vmul.f32 %v465, 0.5
    %v498 = vmul.f32 %v466, 0.5
    %v499 = vmul.f32 %v467, 0.5
    %v500 = vmul.f32 %v468, 0.5
    %v501 = vmul.f32 %v469, 0.5
    %v502 = vmul.f32 %v470, 0.5
    %v503 = vmul.f32 %v471, 0.5
    %v504 = vld [vmem:[%s1] sm:$0x1]
    %v505 = vlaneseq
    %v506 = vshrl.u32 %v505, 7
    %v507 = vsub.s32 0, %v506
    %v508 = vrot.slane %v504, %v507
    %v509 = vmul.f32 %v17, %v508
    %v510 = vmul.f32 %v18, %v508
    %v511 = vmul.f32 %v19, %v508
    %v512 = vmul.f32 %v20, %v508
    %v513 = vmul.f32 %v21, %v508
    %v514 = vmul.f32 %v22, %v508
    %v515 = vmul.f32 %v23, %v508
    %v516 = vmul.f32 %v24, %v508
    %v517 = vmul.f32 %v25, %v508
    %v518 = vmul.f32 %v26, %v508
    %v519 = vmul.f32 %v27, %v508
    %v520 = vmul.f32 %v28, %v508
    %v521 = vmul.f32 %v29, %v508
    %v522 = vmul.f32 %v30, %v508
    %v523 = vmul.f32 %v31, %v508
    %v524 = vmul.f32 %v32, %v508
    %v525 = vmul.f32 %v33, %v508
    %v526 = vmul.f32 %v34, %v508
    %v527 = vmul.f32 %v35, %v508
    %v528 = vmul.f32 %v36, %v508
    %v529 = vmul.f32 %v37, %v508
    %v530 = vmul.f32 %v38, %v508
    %v531 = vmul.f32 %v39, %v508
    %v532 = vmul.f32 %v40, %v508
    %v533 = vmul.f32 %v41, %v508
    %v534 = vmul.f32 %v42, %v508
    %v535 = vmul.f32 %v43, %v508
    %v536 = vmul.f32 %v44, %v508
    %v537 = vmul.f32 %v45, %v508
    %v538 = vmul.f32 %v46, %v508
    %v539 = vmul.f32 %v47, %v508
    %v540 = vmul.f32 %v48, %v508
    %542 = vset.pattern.permute.xlu0 0
    %543 = vperm.xlu0 %542, %v472
    %v544 = vpop.permute.xlu0 %543
    %547 = vset.pattern.permute.xlu0 0
    %548 = vperm.xlu0 %547, %v473
    %v549 = vpop.permute.xlu0 %548
    %552 = vset.pattern.permute.xlu0 0
    %553 = vperm.xlu0 %552, %v474
    %v554 = vpop.permute.xlu0 %553
    %557 = vset.pattern.permute.xlu0 0
    %558 = vperm.xlu0 %557, %v475
    %v559 = vpop.permute.xlu0 %558
    %562 = vset.pattern.permute.xlu0 0
    %563 = vperm.xlu0 %562, %v476
    %v564 = vpop.permute.xlu0 %563
    %567 = vset.pattern.permute.xlu0 0
    %568 = vperm.xlu0 %567, %v477
    %v569 = vpop.permute.xlu0 %568
    %572 = vset.pattern.permute.xlu0 0
    %573 = vperm.xlu0 %572, %v478
    %v574 = vpop.permute.xlu0 %573
    %577 = vset.pattern.permute.xlu0 0
    %578 = vperm.xlu0 %577, %v479
    %v579 = vpop.permute.xlu0 %578
    %582 = vset.pattern.permute.xlu0 0
    %583 = vperm.xlu0 %582, %v480
    %v584 = vpop.permute.xlu0 %583
    %587 = vset.pattern.permute.xlu0 0
    %588 = vperm.xlu0 %587, %v481
    %v589 = vpop.permute.xlu0 %588
    %592 = vset.pattern.permute.xlu0 0
    %593 = vperm.xlu0 %592, %v482
    %v594 = vpop.permute.xlu0 %593
    %597 = vset.pattern.permute.xlu0 0
    %598 = vperm.xlu0 %597, %v483
    %v599 = vpop.permute.xlu0 %598
    %602 = vset.pattern.permute.xlu0 0
    %603 = vperm.xlu0 %602, %v484
    %v604 = vpop.permute.xlu0 %603
    %607 = vset.pattern.permute.xlu0 0
    %608 = vperm.xlu0 %607, %v485
    %v609 = vpop.permute.xlu0 %608
    %612 = vset.pattern.permute.xlu0 0
    %613 = vperm.xlu0 %612, %v486
    %v614 = vpop.permute.xlu0 %613
    %617 = vset.pattern.permute.xlu0 0
    %618 = vperm.xlu0 %617, %v487
    %v619 = vpop.permute.xlu0 %618
    %622 = vset.pattern.permute.xlu0 0
    %623 = vperm.xlu0 %622, %v488
    %v624 = vpop.permute.xlu0 %623
    %627 = vset.pattern.permute.xlu0 0
    %628 = vperm.xlu0 %627, %v489
    %v629 = vpop.permute.xlu0 %628
    %632 = vset.pattern.permute.xlu0 0
    %633 = vperm.xlu0 %632, %v490
    %v634 = vpop.permute.xlu0 %633
    %637 = vset.pattern.permute.xlu0 0
    %638 = vperm.xlu0 %637, %v491
    %v639 = vpop.permute.xlu0 %638
    %642 = vset.pattern.permute.xlu0 0
    %643 = vperm.xlu0 %642, %v492
    %v644 = vpop.permute.xlu0 %643
    %647 = vset.pattern.permute.xlu0 0
    %648 = vperm.xlu0 %647, %v493
    %v649 = vpop.permute.xlu0 %648
    %652 = vset.pattern.permute.xlu0 0
    %653 = vperm.xlu0 %652, %v494
    %v654 = vpop.permute.xlu0 %653
    %657 = vset.pattern.permute.xlu0 0
    %658 = vperm.xlu0 %657, %v495
    %v659 = vpop.permute.xlu0 %658
    %662 = vset.pattern.permute.xlu0 0
    %663 = vperm.xlu0 %662, %v496
    %v664 = vpop.permute.xlu0 %663
    %667 = vset.pattern.permute.xlu0 0
    %668 = vperm.xlu0 %667, %v497
    %v669 = vpop.permute.xlu0 %668
    %672 = vset.pattern.permute.xlu0 0
    %673 = vperm.xlu0 %672, %v498
    %v674 = vpop.permute.xlu0 %673
    %677 = vset.pattern.permute.xlu0 0
    %678 = vperm.xlu0 %677, %v499
    %v679 = vpop.permute.xlu0 %678
    %682 = vset.pattern.permute.xlu0 0
    %683 = vperm.xlu0 %682, %v500
    %v684 = vpop.permute.xlu0 %683
    %687 = vset.pattern.permute.xlu0 0
    %688 = vperm.xlu0 %687, %v501
    %v689 = vpop.permute.xlu0 %688
    %692 = vset.pattern.permute.xlu0 0
    %693 = vperm.xlu0 %692, %v502
    %v694 = vpop.permute.xlu0 %693
    %697 = vset.pattern.permute.xlu0 0
    %698 = vperm.xlu0 %697, %v503
    %v699 = vpop.permute.xlu0 %698
    %v701 = vmul.f32 %v509, %v544
    %v702 = vmul.f32 %v510, %v549
    %v703 = vmul.f32 %v511, %v554
    %v704 = vmul.f32 %v512, %v559
    %v705 = vmul.f32 %v513, %v564
    %v706 = vmul.f32 %v514, %v569
    %v707 = vmul.f32 %v515, %v574
    %v708 = vmul.f32 %v516, %v579
    %v709 = vmul.f32 %v517, %v584
    %v710 = vmul.f32 %v518, %v589
    %v711 = vmul.f32 %v519, %v594
    %v712 = vmul.f32 %v520, %v599
    %v713 = vmul.f32 %v521, %v604
    %v714 = vmul.f32 %v522, %v609
    %v715 = vmul.f32 %v523, %v614
    %v716 = vmul.f32 %v524, %v619
    %v717 = vmul.f32 %v525, %v624
    %v718 = vmul.f32 %v526, %v629
    %v719 = vmul.f32 %v527, %v634
    %v720 = vmul.f32 %v528, %v639
    %v721 = vmul.f32 %v529, %v644
    %v722 = vmul.f32 %v530, %v649
    %v723 = vmul.f32 %v531, %v654
    %v724 = vmul.f32 %v532, %v659
    %v725 = vmul.f32 %v533, %v664
    %v726 = vmul.f32 %v534, %v669
    %v727 = vmul.f32 %v535, %v674
    %v728 = vmul.f32 %v536, %v679
    %v729 = vmul.f32 %v537, %v684
    %v730 = vmul.f32 %v538, %v689
    %v731 = vmul.f32 %v539, %v694
    %v732 = vmul.f32 %v540, %v699
    %733 = vst.msk [vmem:[#allocation2] sm:$0xff] %vm83, %v701
    %734 = vst.msk [vmem:[#allocation2 + $0x8] sm:$0xff] %vm83, %v702
    %735 = vst.msk [vmem:[#allocation2 + $0x10] sm:$0xff] %vm83, %v703
    %736 = vst.msk [vmem:[#allocation2 + $0x18] sm:$0xff] %vm83, %v704
    %737 = vst.msk [vmem:[#allocation2 + $0x20] sm:$0xff] %vm83, %v705
    %738 = vst.msk [vmem:[#allocation2 + $0x28] sm:$0xff] %vm83, %v706
    %739 = vst.msk [vmem:[#allocation2 + $0x30] sm:$0xff] %vm83, %v707
    %740 = vst.msk [vmem:[#allocation2 + $0x38] sm:$0xff] %vm83, %v708
    %741 = vst.msk [vmem:[#allocation2 + $0x40] sm:$0xff] %vm83, %v709
    %742 = vst.msk [vmem:[#allocation2 + $0x48] sm:$0xff] %vm83, %v710
    %743 = vst.msk [vmem:[#allocation2 + $0x50] sm:$0xff] %vm83, %v711
    %744 = vst.msk [vmem:[#allocation2 + $0x58] sm:$0xff] %vm83, %v712
    %745 = vst.msk [vmem:[#allocation2 + $0x60] sm:$0xff] %vm83, %v713
    %746 = vst.msk [vmem:[#allocation2 + $0x68] sm:$0xff] %vm83, %v714
    %747 = vst.msk [vmem:[#allocation2 + $0x70] sm:$0xff] %vm83, %v715
    %748 = vst.msk [vmem:[#allocation2 + $0x78] sm:$0xff] %vm83, %v716
    %749 = vst.msk [vmem:[#allocation2 + $0x80] sm:$0xff] %vm83, %v717
    %750 = vst.msk [vmem:[#allocation2 + $0x88] sm:$0xff] %vm83, %v718
    %751 = vst.msk [vmem:[#allocation2 + $0x90] sm:$0xff] %vm83, %v719
    %752 = vst.msk [vmem:[#allocation2 + $0x98] sm:$0xff] %vm83, %v720
    %753 = vst.msk [vmem:[#allocation2 + $0xa0] sm:$0xff] %vm83, %v721
    %754 = vst.msk [vmem:[#allocation2 + $0xa8] sm:$0xff] %vm83, %v722
    %755 = vst.msk [vmem:[#allocation2 + $0xb0] sm:$0xff] %vm83, %v723
    %756 = vst.msk [vmem:[#allocation2 + $0xb8] sm:$0xff] %vm83, %v724
    %757 = vst.msk [vmem:[#allocation2 + $0xc0] sm:$0xff] %vm83, %v725
    %758 = vst.msk [vmem:[#allocation2 + $0xc8] sm:$0xff] %vm83, %v726
    %759 = vst.msk [vmem:[#allocation2 + $0xd0] sm:$0xff] %vm83, %v727
    %760 = vst.msk [vmem:[#allocation2 + $0xd8] sm:$0xff] %vm83, %v728
    %761 = vst.msk [vmem:[#allocation2 + $0xe0] sm:$0xff] %vm83, %v729
    %762 = vst.msk [vmem:[#allocation2 + $0xe8] sm:$0xff] %vm83, %v730
    %763 = vst.msk [vmem:[#allocation2 + $0xf0] sm:$0xff] %vm83, %v731
    %764 = vst.msk [vmem:[#allocation2 + $0xf8] sm:$0xff] %vm83, %v732
    %v765 = vld [vmem:[%s1 + $0x1] sm:$0x1]
    %v766 = vlaneseq
    %v767 = vshrl.u32 %v766, 7
    %v768 = vsub.s32 0, %v767
    %v769 = vrot.slane %v765, %v768
    %v770 = vmul.f32 %v17, %v769
    %v771 = vmul.f32 %v18, %v769
    %v772 = vmul.f32 %v19, %v769
    %v773 = vmul.f32 %v20, %v769
    %v774 = vmul.f32 %v21, %v769
    %v775 = vmul.f32 %v22, %v769
    %v776 = vmul.f32 %v23, %v769
    %v777 = vmul.f32 %v24, %v769
    %v778 = vmul.f32 %v25, %v769
    %v779 = vmul.f32 %v26, %v769
    %v780 = vmul.f32 %v27, %v769
    %v781 = vmul.f32 %v28, %v769
    %v782 = vmul.f32 %v29, %v769
    %v783 = vmul.f32 %v30, %v769
    %v784 = vmul.f32 %v31, %v769
    %v785 = vmul.f32 %v32, %v769
    %v786 = vmul.f32 %v33, %v769
    %v787 = vmul.f32 %v34, %v769
    %v788 = vmul.f32 %v35, %v769
    %v789 = vmul.f32 %v36, %v769
    %v790 = vmul.f32 %v37, %v769
    %v791 = vmul.f32 %v38, %v769
    %v792 = vmul.f32 %v39, %v769
    %v793 = vmul.f32 %v40, %v769
    %v794 = vmul.f32 %v41, %v769
    %v795 = vmul.f32 %v42, %v769
    %v796 = vmul.f32 %v43, %v769
    %v797 = vmul.f32 %v44, %v769
    %v798 = vmul.f32 %v45, %v769
    %v799 = vmul.f32 %v46, %v769
    %v800 = vmul.f32 %v47, %v769
    %v801 = vmul.f32 %v48, %v769
    %802 = vset.pattern.permute.xlu0 1
    %803 = vperm.xlu0 %802, %v472
    %v804 = vpop.permute.xlu0 %803
    %806 = vset.pattern.permute.xlu0 1
    %807 = vperm.xlu0 %806, %v473
    %v808 = vpop.permute.xlu0 %807
    %810 = vset.pattern.permute.xlu0 1
    %811 = vperm.xlu0 %810, %v474
    %v812 = vpop.permute.xlu0 %811
    %814 = vset.pattern.permute.xlu0 1
    %815 = vperm.xlu0 %814, %v475
    %v816 = vpop.permute.xlu0 %815
    %818 = vset.pattern.permute.xlu0 1
    %819 = vperm.xlu0 %818, %v476
    %v820 = vpop.permute.xlu0 %819
    %822 = vset.pattern.permute.xlu0 1
    %823 = vperm.xlu0 %822, %v477
    %v824 = vpop.permute.xlu0 %823
    %826 = vset.pattern.permute.xlu0 1
    %827 = vperm.xlu0 %826, %v478
    %v828 = vpop.permute.xlu0 %827
    %830 = vset.pattern.permute.xlu0 1
    %831 = vperm.xlu0 %830, %v479
    %v832 = vpop.permute.xlu0 %831
    %834 = vset.pattern.permute.xlu0 1
    %835 = vperm.xlu0 %834, %v480
    %v836 = vpop.permute.xlu0 %835
    %838 = vset.pattern.permute.xlu0 1
    %839 = vperm.xlu0 %838, %v481
    %v840 = vpop.permute.xlu0 %839
    %842 = vset.pattern.permute.xlu0 1
    %843 = vperm.xlu0 %842, %v482
    %v844 = vpop.permute.xlu0 %843
    %846 = vset.pattern.permute.xlu0 1
    %847 = vperm.xlu0 %846, %v483
    %v848 = vpop.permute.xlu0 %847
    %850 = vset.pattern.permute.xlu0 1
    %851 = vperm.xlu0 %850, %v484
    %v852 = vpop.permute.xlu0 %851
    %854 = vset.pattern.permute.xlu0 1
    %855 = vperm.xlu0 %854, %v485
    %v856 = vpop.permute.xlu0 %855
    %858 = vset.pattern.permute.xlu0 1
    %859 = vperm.xlu0 %858, %v486
    %v860 = vpop.permute.xlu0 %859
    %862 = vset.pattern.permute.xlu0 1
    %863 = vperm.xlu0 %862, %v487
    %v864 = vpop.permute.xlu0 %863
    %866 = vset.pattern.permute.xlu0 1
    %867 = vperm.xlu0 %866, %v488
    %v868 = vpop.permute.xlu0 %867
    %870 = vset.pattern.permute.xlu0 1
    %871 = vperm.xlu0 %870, %v489
    %v872 = vpop.permute.xlu0 %871
    %874 = vset.pattern.permute.xlu0 1
    %875 = vperm.xlu0 %874, %v490
    %v876 = vpop.permute.xlu0 %875
    %878 = vset.pattern.permute.xlu0 1
    %879 = vperm.xlu0 %878, %v491
    %v880 = vpop.permute.xlu0 %879
    %882 = vset.pattern.permute.xlu0 1
    %883 = vperm.xlu0 %882, %v492
    %v884 = vpop.permute.xlu0 %883
    %886 = vset.pattern.permute.xlu0 1
    %887 = vperm.xlu0 %886, %v493
    %v888 = vpop.permute.xlu0 %887
    %890 = vset.pattern.permute.xlu0 1
    %891 = vperm.xlu0 %890, %v494
    %v892 = vpop.permute.xlu0 %891
    %894 = vset.pattern.permute.xlu0 1
    %895 = vperm.xlu0 %894, %v495
    %v896 = vpop.permute.xlu0 %895
    %898 = vset.pattern.permute.xlu0 1
    %899 = vperm.xlu0 %898, %v496
    %v900 = vpop.permute.xlu0 %899
    %902 = vset.pattern.permute.xlu0 1
    %903 = vperm.xlu0 %902, %v497
    %v904 = vpop.permute.xlu0 %903
    %906 = vset.pattern.permute.xlu0 1
    %907 = vperm.xlu0 %906, %v498
    %v908 = vpop.permute.xlu0 %907
    %910 = vset.pattern.permute.xlu0 1
    %911 = vperm.xlu0 %910, %v499
    %v912 = vpop.permute.xlu0 %911
    %914 = vset.pattern.permute.xlu0 1
    %915 = vperm.xlu0 %914, %v500
    %v916 = vpop.permute.xlu0 %915
    %918 = vset.pattern.permute.xlu0 1
    %919 = vperm.xlu0 %918, %v501
    %v920 = vpop.permute.xlu0 %919
    %922 = vset.pattern.permute.xlu0 1
    %923 = vperm.xlu0 %922, %v502
    %v924 = vpop.permute.xlu0 %923
    %926 = vset.pattern.permute.xlu0 1
    %927 = vperm.xlu0 %926, %v503
    %v928 = vpop.permute.xlu0 %927
    %v930 = vmul.f32 %v770, %v804
    %v931 = vmul.f32 %v771, %v808
    %v932 = vmul.f32 %v772, %v812
    %v933 = vmul.f32 %v773, %v816
    %v934 = vmul.f32 %v774, %v820
    %v935 = vmul.f32 %v775, %v824
    %v936 = vmul.f32 %v776, %v828
    %v937 = vmul.f32 %v777, %v832
    %v938 = vmul.f32 %v778, %v836
    %v939 = vmul.f32 %v779, %v840
    %v940 = vmul.f32 %v780, %v844
    %v941 = vmul.f32 %v781, %v848
    %v942 = vmul.f32 %v782, %v852
    %v943 = vmul.f32 %v783, %v856
    %v944 = vmul.f32 %v784, %v860
    %v945 = vmul.f32 %v785, %v864
    %v946 = vmul.f32 %v786, %v868
    %v947 = vmul.f32 %v787, %v872
    %v948 = vmul.f32 %v788, %v876
    %v949 = vmul.f32 %v789, %v880
    %v950 = vmul.f32 %v790, %v884
    %v951 = vmul.f32 %v791, %v888
    %v952 = vmul.f32 %v792, %v892
    %v953 = vmul.f32 %v793, %v896
    %v954 = vmul.f32 %v794, %v900
    %v955 = vmul.f32 %v795, %v904
    %v956 = vmul.f32 %v796, %v908
    %v957 = vmul.f32 %v797, %v912
    %v958 = vmul.f32 %v798, %v916
    %v959 = vmul.f32 %v799, %v920
    %v960 = vmul.f32 %v800, %v924
    %v961 = vmul.f32 %v801, %v928
    %994 = vrot.lane.b32.xlu0 %v930, 32
    %v995 = vpop.permute.xlu0 %994
    %996 = vrot.lane.b32.xlu0 %v931, 32
    %v997 = vpop.permute.xlu0 %996
    %998 = vrot.lane.b32.xlu0 %v932, 32
    %v999 = vpop.permute.xlu0 %998
    %1000 = vrot.lane.b32.xlu0 %v933, 32
    %v1001 = vpop.permute.xlu0 %1000
    %1002 = vrot.lane.b32.xlu0 %v934, 32
    %v1003 = vpop.permute.xlu0 %1002
    %1004 = vrot.lane.b32.xlu0 %v935, 32
    %v1005 = vpop.permute.xlu0 %1004
    %1006 = vrot.lane.b32.xlu0 %v936, 32
    %v1007 = vpop.permute.xlu0 %1006
    %1008 = vrot.lane.b32.xlu0 %v937, 32
    %v1009 = vpop.permute.xlu0 %1008
    %1010 = vrot.lane.b32.xlu0 %v938, 32
    %v1011 = vpop.permute.xlu0 %1010
    %1012 = vrot.lane.b32.xlu0 %v939, 32
    %v1013 = vpop.permute.xlu0 %1012
    %1014 = vrot.lane.b32.xlu0 %v940, 32
    %v1015 = vpop.permute.xlu0 %1014
    %1016 = vrot.lane.b32.xlu0 %v941, 32
    %v1017 = vpop.permute.xlu0 %1016
    %1018 = vrot.lane.b32.xlu0 %v942, 32
    %v1019 = vpop.permute.xlu0 %1018
    %1020 = vrot.lane.b32.xlu0 %v943, 32
    %v1021 = vpop.permute.xlu0 %1020
    %1022 = vrot.lane.b32.xlu0 %v944, 32
    %v1023 = vpop.permute.xlu0 %1022
    %1024 = vrot.lane.b32.xlu0 %v945, 32
    %v1025 = vpop.permute.xlu0 %1024
    %1026 = vrot.lane.b32.xlu0 %v946, 32
    %v1027 = vpop.permute.xlu0 %1026
    %1028 = vrot.lane.b32.xlu0 %v947, 32
    %v1029 = vpop.permute.xlu0 %1028
    %1030 = vrot.lane.b32.xlu0 %v948, 32
    %v1031 = vpop.permute.xlu0 %1030
    %1032 = vrot.lane.b32.xlu0 %v949, 32
    %v1033 = vpop.permute.xlu0 %1032
    %1034 = vrot.lane.b32.xlu0 %v950, 32
    %v1035 = vpop.permute.xlu0 %1034
    %1036 = vrot.lane.b32.xlu0 %v951, 32
    %v1037 = vpop.permute.xlu0 %1036
    %1038 = vrot.lane.b32.xlu0 %v952, 32
    %v1039 = vpop.permute.xlu0 %1038
    %1040 = vrot.lane.b32.xlu0 %v953, 32
    %v1041 = vpop.permute.xlu0 %1040
    %1042 = vrot.lane.b32.xlu0 %v954, 32
    %v1043 = vpop.permute.xlu0 %1042
    %1044 = vrot.lane.b32.xlu0 %v955, 32
    %v1045 = vpop.permute.xlu0 %1044
    %1046 = vrot.lane.b32.xlu0 %v956, 32
    %v1047 = vpop.permute.xlu0 %1046
    %1048 = vrot.lane.b32.xlu0 %v957, 32
    %v1049 = vpop.permute.xlu0 %1048
    %1050 = vrot.lane.b32.xlu0 %v958, 32
    %v1051 = vpop.permute.xlu0 %1050
    %1052 = vrot.lane.b32.xlu0 %v959, 32
    %v1053 = vpop.permute.xlu0 %1052
    %1054 = vrot.lane.b32.xlu0 %v960, 32
    %v1055 = vpop.permute.xlu0 %1054
    %1056 = vrot.lane.b32.xlu0 %v961, 32
    %v1057 = vpop.permute.xlu0 %1056
    %vm1090 = vcmask 523520
    %1091 = vst.msk [vmem:[#allocation2] sm:$0xff] %vm1090, %v995
    %1092 = vst.msk [vmem:[#allocation2 + $0x8] sm:$0xff] %vm1090, %v997
    %1093 = vst.msk [vmem:[#allocation2 + $0x10] sm:$0xff] %vm1090, %v999
    %1094 = vst.msk [vmem:[#allocation2 + $0x18] sm:$0xff] %vm1090, %v1001
    %1095 = vst.msk [vmem:[#allocation2 + $0x20] sm:$0xff] %vm1090, %v1003
    %1096 = vst.msk [vmem:[#allocation2 + $0x28] sm:$0xff] %vm1090, %v1005
    %1097 = vst.msk [vmem:[#allocation2 + $0x30] sm:$0xff] %vm1090, %v1007
    %1098 = vst.msk [vmem:[#allocation2 + $0x38] sm:$0xff] %vm1090, %v1009
    %1099 = vst.msk [vmem:[#allocation2 + $0x40] sm:$0xff] %vm1090, %v1011
    %1100 = vst.msk [vmem:[#allocation2 + $0x48] sm:$0xff] %vm1090, %v1013
    %1101 = vst.msk [vmem:[#allocation2 + $0x50] sm:$0xff] %vm1090, %v1015
    %1102 = vst.msk [vmem:[#allocation2 + $0x58] sm:$0xff] %vm1090, %v1017
    %1103 = vst.msk [vmem:[#allocation2 + $0x60] sm:$0xff] %vm1090, %v1019
    %1104 = vst.msk [vmem:[#allocation2 + $0x68] sm:$0xff] %vm1090, %v1021
    %1105 = vst.msk [vmem:[#allocation2 + $0x70] sm:$0xff] %vm1090, %v1023
    %1106 = vst.msk [vmem:[#allocation2 + $0x78] sm:$0xff] %vm1090, %v1025
    %1107 = vst.msk [vmem:[#allocation2 + $0x80] sm:$0xff] %vm1090, %v1027
    %1108 = vst.msk [vmem:[#allocation2 + $0x88] sm:$0xff] %vm1090, %v1029
    %1109 = vst.msk [vmem:[#allocation2 + $0x90] sm:$0xff] %vm1090, %v1031
    %1110 = vst.msk [vmem:[#allocation2 + $0x98] sm:$0xff] %vm1090, %v1033
    %1111 = vst.msk [vmem:[#allocation2 + $0xa0] sm:$0xff] %vm1090, %v1035
    %1112 = vst.msk [vmem:[#allocation2 + $0xa8] sm:$0xff] %vm1090, %v1037
    %1113 = vst.msk [vmem:[#allocation2 + $0xb0] sm:$0xff] %vm1090, %v1039
    %1114 = vst.msk [vmem:[#allocation2 + $0xb8] sm:$0xff] %vm1090, %v1041
    %1115 = vst.msk [vmem:[#allocation2 + $0xc0] sm:$0xff] %vm1090, %v1043
    %1116 = vst.msk [vmem:[#allocation2 + $0xc8] sm:$0xff] %vm1090, %v1045
    %1117 = vst.msk [vmem:[#allocation2 + $0xd0] sm:$0xff] %vm1090, %v1047
    %1118 = vst.msk [vmem:[#allocation2 + $0xd8] sm:$0xff] %vm1090, %v1049
    %1119 = vst.msk [vmem:[#allocation2 + $0xe0] sm:$0xff] %vm1090, %v1051
    %1120 = vst.msk [vmem:[#allocation2 + $0xe8] sm:$0xff] %vm1090, %v1053
    %1121 = vst.msk [vmem:[#allocation2 + $0xf0] sm:$0xff] %vm1090, %v1055
    %1122 = vst.msk [vmem:[#allocation2 + $0xf8] sm:$0xff] %vm1090, %v1057
    %v1123 = vld [vmem:[%s1 + $0x2] sm:$0x1]
    %v1124 = vlaneseq
    %v1125 = vshrl.u32 %v1124, 7
    %v1126 = vsub.s32 0, %v1125
    %v1127 = vrot.slane %v1123, %v1126
    %v1128 = vmul.f32 %v17, %v1127
    %v1129 = vmul.f32 %v18, %v1127
    %v1130 = vmul.f32 %v19, %v1127
    %v1131 = vmul.f32 %v20, %v1127
    %v1132 = vmul.f32 %v21, %v1127
    %v1133 = vmul.f32 %v22, %v1127
    %v1134 = vmul.f32 %v23, %v1127
    %v1135 = vmul.f32 %v24, %v1127
    %v1136 = vmul.f32 %v25, %v1127
    %v1137 = vmul.f32 %v26, %v1127
    %v1138 = vmul.f32 %v27, %v1127
    %v1139 = vmul.f32 %v28, %v1127
    %v1140 = vmul.f32 %v29, %v1127
    %v1141 = vmul.f32 %v30, %v1127
    %v1142 = vmul.f32 %v31, %v1127
    %v1143 = vmul.f32 %v32, %v1127
    %v1144 = vmul.f32 %v33, %v1127
    %v1145 = vmul.f32 %v34, %v1127
    %v1146 = vmul.f32 %v35, %v1127
    %v1147 = vmul.f32 %v36, %v1127
    %v1148 = vmul.f32 %v37, %v1127
    %v1149 = vmul.f32 %v38, %v1127
    %v1150 = vmul.f32 %v39, %v1127
    %v1151 = vmul.f32 %v40, %v1127
    %v1152 = vmul.f32 %v41, %v1127
    %v1153 = vmul.f32 %v42, %v1127
    %v1154 = vmul.f32 %v43, %v1127
    %v1155 = vmul.f32 %v44, %v1127
    %v1156 = vmul.f32 %v45, %v1127
    %v1157 = vmul.f32 %v46, %v1127
    %v1158 = vmul.f32 %v47, %v1127
    %v1159 = vmul.f32 %v48, %v1127
    %1160 = vset.pattern.permute.xlu0 2
    %1161 = vperm.xlu0 %1160, %v472
    %v1162 = vpop.permute.xlu0 %1161
    %1164 = vset.pattern.permute.xlu0 2
    %1165 = vperm.xlu0 %1164, %v473
    %v1166 = vpop.permute.xlu0 %1165
    %1168 = vset.pattern.permute.xlu0 2
    %1169 = vperm.xlu0 %1168, %v474
    %v1170 = vpop.permute.xlu0 %1169
    %1172 = vset.pattern.permute.xlu0 2
    %1173 = vperm.xlu0 %1172, %v475
    %v1174 = vpop.permute.xlu0 %1173
    %1176 = vset.pattern.permute.xlu0 2
    %1177 = vperm.xlu0 %1176, %v476
    %v1178 = vpop.permute.xlu0 %1177
    %1180 = vset.pattern.permute.xlu0 2
    %1181 = vperm.xlu0 %1180, %v477
    %v1182 = vpop.permute.xlu0 %1181
    %1184 = vset.pattern.permute.xlu0 2
    %1185 = vperm.xlu0 %1184, %v478
    %v1186 = vpop.permute.xlu0 %1185
    %1188 = vset.pattern.permute.xlu0 2
    %1189 = vperm.xlu0 %1188, %v479
    %v1190 = vpop.permute.xlu0 %1189
    %1192 = vset.pattern.permute.xlu0 2
    %1193 = vperm.xlu0 %1192, %v480
    %v1194 = vpop.permute.xlu0 %1193
    %1196 = vset.pattern.permute.xlu0 2
    %1197 = vperm.xlu0 %1196, %v481
    %v1198 = vpop.permute.xlu0 %1197
    %1200 = vset.pattern.permute.xlu0 2
    %1201 = vperm.xlu0 %1200, %v482
    %v1202 = vpop.permute.xlu0 %1201
    %1204 = vset.pattern.permute.xlu0 2
    %1205 = vperm.xlu0 %1204, %v483
    %v1206 = vpop.permute.xlu0 %1205
    %1208 = vset.pattern.permute.xlu0 2
    %1209 = vperm.xlu0 %1208, %v484
    %v1210 = vpop.permute.xlu0 %1209
    %1212 = vset.pattern.permute.xlu0 2
    %1213 = vperm.xlu0 %1212, %v485
    %v1214 = vpop.permute.xlu0 %1213
    %1216 = vset.pattern.permute.xlu0 2
    %1217 = vperm.xlu0 %1216, %v486
    %v1218 = vpop.permute.xlu0 %1217
    %1220 = vset.pattern.permute.xlu0 2
    %1221 = vperm.xlu0 %1220, %v487
    %v1222 = vpop.permute.xlu0 %1221
    %1224 = vset.pattern.permute.xlu0 2
    %1225 = vperm.xlu0 %1224, %v488
    %v1226 = vpop.permute.xlu0 %1225
    %1228 = vset.pattern.permute.xlu0 2
    %1229 = vperm.xlu0 %1228, %v489
    %v1230 = vpop.permute.xlu0 %1229
    %1232 = vset.pattern.permute.xlu0 2
    %1233 = vperm.xlu0 %1232, %v490
    %v1234 = vpop.permute.xlu0 %1233
    %1236 = vset.pattern.permute.xlu0 2
    %1237 = vperm.xlu0 %1236, %v491
    %v1238 = vpop.permute.xlu0 %1237
    %1240 = vset.pattern.permute.xlu0 2
    %1241 = vperm.xlu0 %1240, %v492
    %v1242 = vpop.permute.xlu0 %1241
    %1244 = vset.pattern.permute.xlu0 2
    %1245 = vperm.xlu0 %1244, %v493
    %v1246 = vpop.permute.xlu0 %1245
    %1248 = vset.pattern.permute.xlu0 2
    %1249 = vperm.xlu0 %1248, %v494
    %v1250 = vpop.permute.xlu0 %1249
    %1252 = vset.pattern.permute.xlu0 2
    %1253 = vperm.xlu0 %1252, %v495
    %v1254 = vpop.permute.xlu0 %1253
    %1256 = vset.pattern.permute.xlu0 2
    %1257 = vperm.xlu0 %1256, %v496
    %v1258 = vpop.permute.xlu0 %1257
    %1260 = vset.pattern.permute.xlu0 2
    %1261 = vperm.xlu0 %1260, %v497
    %v1262 = vpop.permute.xlu0 %1261
    %1264 = vset.pattern.permute.xlu0 2
    %1265 = vperm.xlu0 %1264, %v498
    %v1266 = vpop.permute.xlu0 %1265
    %1268 = vset.pattern.permute.xlu0 2
    %1269 = vperm.xlu0 %1268, %v499
    %v1270 = vpop.permute.xlu0 %1269
    %1272 = vset.pattern.permute.xlu0 2
    %1273 = vperm.xlu0 %1272, %v500
    %v1274 = vpop.permute.xlu0 %1273
    %1276 = vset.pattern.permute.xlu0 2
    %1277 = vperm.xlu0 %1276, %v501
    %v1278 = vpop.permute.xlu0 %1277
    %1280 = vset.pattern.permute.xlu0 2
    %1281 = vperm.xlu0 %1280, %v502
    %v1282 = vpop.permute.xlu0 %1281
    %1284 = vset.pattern.permute.xlu0 2
    %1285 = vperm.xlu0 %1284, %v503
    %v1286 = vpop.permute.xlu0 %1285
    %v1288 = vmul.f32 %v1128, %v1162
    %v1289 = vmul.f32 %v1129, %v1166
    %v1290 = vmul.f32 %v1130, %v1170
    %v1291 = vmul.f32 %v1131, %v1174
    %v1292 = vmul.f32 %v1132, %v1178
    %v1293 = vmul.f32 %v1133, %v1182
    %v1294 = vmul.f32 %v1134, %v1186
    %v1295 = vmul.f32 %v1135, %v1190
    %v1296 = vmul.f32 %v1136, %v1194
    %v1297 = vmul.f32 %v1137, %v1198
    %v1298 = vmul.f32 %v1138, %v1202
    %v1299 = vmul.f32 %v1139, %v1206
    %v1300 = vmul.f32 %v1140, %v1210
    %v1301 = vmul.f32 %v1141, %v1214
    %v1302 = vmul.f32 %v1142, %v1218
    %v1303 = vmul.f32 %v1143, %v1222
    %v1304 = vmul.f32 %v1144, %v1226
    %v1305 = vmul.f32 %v1145, %v1230
    %v1306 = vmul.f32 %v1146, %v1234
    %v1307 = vmul.f32 %v1147, %v1238
    %v1308 = vmul.f32 %v1148, %v1242
    %v1309 = vmul.f32 %v1149, %v1246
    %v1310 = vmul.f32 %v1150, %v1250
    %v1311 = vmul.f32 %v1151, %v1254
    %v1312 = vmul.f32 %v1152, %v1258
    %v1313 = vmul.f32 %v1153, %v1262
    %v1314 = vmul.f32 %v1154, %v1266
    %v1315 = vmul.f32 %v1155, %v1270
    %v1316 = vmul.f32 %v1156, %v1274
    %v1317 = vmul.f32 %v1157, %v1278
    %v1318 = vmul.f32 %v1158, %v1282
    %v1319 = vmul.f32 %v1159, %v1286
    %1352 = vrot.lane.b32.xlu0 %v1288, 64
    %v1353 = vpop.permute.xlu0 %1352
    %1354 = vrot.lane.b32.xlu0 %v1289, 64
    %v1355 = vpop.permute.xlu0 %1354
    %1356 = vrot.lane.b32.xlu0 %v1290, 64
    %v1357 = vpop.permute.xlu0 %1356
    %1358 = vrot.lane.b32.xlu0 %v1291, 64
    %v1359 = vpop.permute.xlu0 %1358
    %1360 = vrot.lane.b32.xlu0 %v1292, 64
    %v1361 = vpop.permute.xlu0 %1360
    %1362 = vrot.lane.b32.xlu0 %v1293, 64
    %v1363 = vpop.permute.xlu0 %1362
    %1364 = vrot.lane.b32.xlu0 %v1294, 64
    %v1365 = vpop.permute.xlu0 %1364
    %1366 = vrot.lane.b32.xlu0 %v1295, 64
    %v1367 = vpop.permute.xlu0 %1366
    %1368 = vrot.lane.b32.xlu0 %v1296, 64
    %v1369 = vpop.permute.xlu0 %1368
    %1370 = vrot.lane.b32.xlu0 %v1297, 64
    %v1371 = vpop.permute.xlu0 %1370
    %1372 = vrot.lane.b32.xlu0 %v1298, 64
    %v1373 = vpop.permute.xlu0 %1372
    %1374 = vrot.lane.b32.xlu0 %v1299, 64
    %v1375 = vpop.permute.xlu0 %1374
    %1376 = vrot.lane.b32.xlu0 %v1300, 64
    %v1377 = vpop.permute.xlu0 %1376
    %1378 = vrot.lane.b32.xlu0 %v1301, 64
    %v1379 = vpop.permute.xlu0 %1378
    %1380 = vrot.lane.b32.xlu0 %v1302, 64
    %v1381 = vpop.permute.xlu0 %1380
    %1382 = vrot.lane.b32.xlu0 %v1303, 64
    %v1383 = vpop.permute.xlu0 %1382
    %1384 = vrot.lane.b32.xlu0 %v1304, 64
    %v1385 = vpop.permute.xlu0 %1384
    %1386 = vrot.lane.b32.xlu0 %v1305, 64
    %v1387 = vpop.permute.xlu0 %1386
    %1388 = vrot.lane.b32.xlu0 %v1306, 64
    %v1389 = vpop.permute.xlu0 %1388
    %1390 = vrot.lane.b32.xlu0 %v1307, 64
    %v1391 = vpop.permute.xlu0 %1390
    %1392 = vrot.lane.b32.xlu0 %v1308, 64
    %v1393 = vpop.permute.xlu0 %1392
    %1394 = vrot.lane.b32.xlu0 %v1309, 64
    %v1395 = vpop.permute.xlu0 %1394
    %1396 = vrot.lane.b32.xlu0 %v1310, 64
    %v1397 = vpop.permute.xlu0 %1396
    %1398 = vrot.lane.b32.xlu0 %v1311, 64
    %v1399 = vpop.permute.xlu0 %1398
    %1400 = vrot.lane.b32.xlu0 %v1312, 64
    %v1401 = vpop.permute.xlu0 %1400
    %1402 = vrot.lane.b32.xlu0 %v1313, 64
    %v1403 = vpop.permute.xlu0 %1402
    %1404 = vrot.lane.b32.xlu0 %v1314, 64
    %v1405 = vpop.permute.xlu0 %1404
    %1406 = vrot.lane.b32.xlu0 %v1315, 64
    %v1407 = vpop.permute.xlu0 %1406
    %1408 = vrot.lane.b32.xlu0 %v1316, 64
    %v1409 = vpop.permute.xlu0 %1408
    %1410 = vrot.lane.b32.xlu0 %v1317, 64
    %v1411 = vpop.permute.xlu0 %1410
    %1412 = vrot.lane.b32.xlu0 %v1318, 64
    %v1413 = vpop.permute.xlu0 %1412
    %1414 = vrot.lane.b32.xlu0 %v1319, 64
    %v1415 = vpop.permute.xlu0 %1414
    %vm1448 = vcmask 785920
    %1449 = vst.msk [vmem:[#allocation2] sm:$0xff] %vm1448, %v1353
    %1450 = vst.msk [vmem:[#allocation2 + $0x8] sm:$0xff] %vm1448, %v1355
    %1451 = vst.msk [vmem:[#allocation2 + $0x10] sm:$0xff] %vm1448, %v1357
    %1452 = vst.msk [vmem:[#allocation2 + $0x18] sm:$0xff] %vm1448, %v1359
    %1453 = vst.msk [vmem:[#allocation2 + $0x20] sm:$0xff] %vm1448, %v1361
    %1454 = vst.msk [vmem:[#allocation2 + $0x28] sm:$0xff] %vm1448, %v1363
    %1455 = vst.msk [vmem:[#allocation2 + $0x30] sm:$0xff] %vm1448, %v1365
    %1456 = vst.msk [vmem:[#allocation2 + $0x38] sm:$0xff] %vm1448, %v1367
    %1457 = vst.msk [vmem:[#allocation2 + $0x40] sm:$0xff] %vm1448, %v1369
    %1458 = vst.msk [vmem:[#allocation2 + $0x48] sm:$0xff] %vm1448, %v1371
    %1459 = vst.msk [vmem:[#allocation2 + $0x50] sm:$0xff] %vm1448, %v1373
    %1460 = vst.msk [vmem:[#allocation2 + $0x58] sm:$0xff] %vm1448, %v1375
    %1461 = vst.msk [vmem:[#allocation2 + $0x60] sm:$0xff] %vm1448, %v1377
    %1462 = vst.msk [vmem:[#allocation2 + $0x68] sm:$0xff] %vm1448, %v1379
    %1463 = vst.msk [vmem:[#allocation2 + $0x70] sm:$0xff] %vm1448, %v1381
    %1464 = vst.msk [vmem:[#allocation2 + $0x78] sm:$0xff] %vm1448, %v1383
    %1465 = vst.msk [vmem:[#allocation2 + $0x80] sm:$0xff] %vm1448, %v1385
    %1466 = vst.msk [vmem:[#allocation2 + $0x88] sm:$0xff] %vm1448, %v1387
    %1467 = vst.msk [vmem:[#allocation2 + $0x90] sm:$0xff] %vm1448, %v1389
    %1468 = vst.msk [vmem:[#allocation2 + $0x98] sm:$0xff] %vm1448, %v1391
    %1469 = vst.msk [vmem:[#allocation2 + $0xa0] sm:$0xff] %vm1448, %v1393
    %1470 = vst.msk [vmem:[#allocation2 + $0xa8] sm:$0xff] %vm1448, %v1395
    %1471 = vst.msk [vmem:[#allocation2 + $0xb0] sm:$0xff] %vm1448, %v1397
    %1472 = vst.msk [vmem:[#allocation2 + $0xb8] sm:$0xff] %vm1448, %v1399
    %1473 = vst.msk [vmem:[#allocation2 + $0xc0] sm:$0xff] %vm1448, %v1401
    %1474 = vst.msk [vmem:[#allocation2 + $0xc8] sm:$0xff] %vm1448, %v1403
    %1475 = vst.msk [vmem:[#allocation2 + $0xd0] sm:$0xff] %vm1448, %v1405
    %1476 = vst.msk [vmem:[#allocation2 + $0xd8] sm:$0xff] %vm1448, %v1407
    %1477 = vst.msk [vmem:[#allocation2 + $0xe0] sm:$0xff] %vm1448, %v1409
    %1478 = vst.msk [vmem:[#allocation2 + $0xe8] sm:$0xff] %vm1448, %v1411
    %1479 = vst.msk [vmem:[#allocation2 + $0xf0] sm:$0xff] %vm1448, %v1413
    %1480 = vst.msk [vmem:[#allocation2 + $0xf8] sm:$0xff] %vm1448, %v1415
    %v1481 = vld [vmem:[%s1 + $0x3] sm:$0x1]
    %v1482 = vlaneseq
    %v1483 = vshrl.u32 %v1482, 7
    %v1484 = vsub.s32 0, %v1483
    %v1485 = vrot.slane %v1481, %v1484
    %v1486 = vmul.f32 %v17, %v1485
    %v1487 = vmul.f32 %v18, %v1485
    %v1488 = vmul.f32 %v19, %v1485
    %v1489 = vmul.f32 %v20, %v1485
    %v1490 = vmul.f32 %v21, %v1485
    %v1491 = vmul.f32 %v22, %v1485
    %v1492 = vmul.f32 %v23, %v1485
    %v1493 = vmul.f32 %v24, %v1485
    %v1494 = vmul.f32 %v25, %v1485
    %v1495 = vmul.f32 %v26, %v1485
    %v1496 = vmul.f32 %v27, %v1485
    %v1497 = vmul.f32 %v28, %v1485
    %v1498 = vmul.f32 %v29, %v1485
    %v1499 = vmul.f32 %v30, %v1485
    %v1500 = vmul.f32 %v31, %v1485
    %v1501 = vmul.f32 %v32, %v1485
    %v1502 = vmul.f32 %v33, %v1485
    %v1503 = vmul.f32 %v34, %v1485
    %v1504 = vmul.f32 %v35, %v1485
    %v1505 = vmul.f32 %v36, %v1485
    %v1506 = vmul.f32 %v37, %v1485
    %v1507 = vmul.f32 %v38, %v1485
    %v1508 = vmul.f32 %v39, %v1485
    %v1509 = vmul.f32 %v40, %v1485
    %v1510 = vmul.f32 %v41, %v1485
    %v1511 = vmul.f32 %v42, %v1485
    %v1512 = vmul.f32 %v43, %v1485
    %v1513 = vmul.f32 %v44, %v1485
    %v1514 = vmul.f32 %v45, %v1485
    %v1515 = vmul.f32 %v46, %v1485
    %v1516 = vmul.f32 %v47, %v1485
    %v1517 = vmul.f32 %v48, %v1485
    %1518 = vset.pattern.permute.xlu0 3
    %1519 = vperm.xlu0 %1518, %v472
    %v1520 = vpop.permute.xlu0 %1519
    %1522 = vset.pattern.permute.xlu0 3
    %1523 = vperm.xlu0 %1522, %v473
    %v1524 = vpop.permute.xlu0 %1523
    %1526 = vset.pattern.permute.xlu0 3
    %1527 = vperm.xlu0 %1526, %v474
    %v1528 = vpop.permute.xlu0 %1527
    %1530 = vset.pattern.permute.xlu0 3
    %1531 = vperm.xlu0 %1530, %v475
    %v1532 = vpop.permute.xlu0 %1531
    %1534 = vset.pattern.permute.xlu0 3
    %1535 = vperm.xlu0 %1534, %v476
    %v1536 = vpop.permute.xlu0 %1535
    %1538 = vset.pattern.permute.xlu0 3
    %1539 = vperm.xlu0 %1538, %v477
    %v1540 = vpop.permute.xlu0 %1539
    %1542 = vset.pattern.permute.xlu0 3
    %1543 = vperm.xlu0 %1542, %v478
    %v1544 = vpop.permute.xlu0 %1543
    %1546 = vset.pattern.permute.xlu0 3
    %1547 = vperm.xlu0 %1546, %v479
    %v1548 = vpop.permute.xlu0 %1547
    %1550 = vset.pattern.permute.xlu0 3
    %1551 = vperm.xlu0 %1550, %v480
    %v1552 = vpop.permute.xlu0 %1551
    %1554 = vset.pattern.permute.xlu0 3
    %1555 = vperm.xlu0 %1554, %v481
    %v1556 = vpop.permute.xlu0 %1555
    %1558 = vset.pattern.permute.xlu0 3
    %1559 = vperm.xlu0 %1558, %v482
    %v1560 = vpop.permute.xlu0 %1559
    %1562 = vset.pattern.permute.xlu0 3
    %1563 = vperm.xlu0 %1562, %v483
    %v1564 = vpop.permute.xlu0 %1563
    %1566 = vset.pattern.permute.xlu0 3
    %1567 = vperm.xlu0 %1566, %v484
    %v1568 = vpop.permute.xlu0 %1567
    %1570 = vset.pattern.permute.xlu0 3
    %1571 = vperm.xlu0 %1570, %v485
    %v1572 = vpop.permute.xlu0 %1571
    %1574 = vset.pattern.permute.xlu0 3
    %1575 = vperm.xlu0 %1574, %v486
    %v1576 = vpop.permute.xlu0 %1575
    %1578 = vset.pattern.permute.xlu0 3
    %1579 = vperm.xlu0 %1578, %v487
    %v1580 = vpop.permute.xlu0 %1579
    %1582 = vset.pattern.permute.xlu0 3
    %1583 = vperm.xlu0 %1582, %v488
    %v1584 = vpop.permute.xlu0 %1583
    %1586 = vset.pattern.permute.xlu0 3
    %1587 = vperm.xlu0 %1586, %v489
    %v1588 = vpop.permute.xlu0 %1587
    %1590 = vset.pattern.permute.xlu0 3
    %1591 = vperm.xlu0 %1590, %v490
    %v1592 = vpop.permute.xlu0 %1591
    %1594 = vset.pattern.permute.xlu0 3
    %1595 = vperm.xlu0 %1594, %v491
    %v1596 = vpop.permute.xlu0 %1595
    %1598 = vset.pattern.permute.xlu0 3
    %1599 = vperm.xlu0 %1598, %v492
    %v1600 = vpop.permute.xlu0 %1599
    %1602 = vset.pattern.permute.xlu0 3
    %1603 = vperm.xlu0 %1602, %v493
    %v1604 = vpop.permute.xlu0 %1603
    %1606 = vset.pattern.permute.xlu0 3
    %1607 = vperm.xlu0 %1606, %v494
    %v1608 = vpop.permute.xlu0 %1607
    %1610 = vset.pattern.permute.xlu0 3
    %1611 = vperm.xlu0 %1610, %v495
    %v1612 = vpop.permute.xlu0 %1611
    %1614 = vset.pattern.permute.xlu0 3
    %1615 = vperm.xlu0 %1614, %v496
    %v1616 = vpop.permute.xlu0 %1615
    %1618 = vset.pattern.permute.xlu0 3
    %1619 = vperm.xlu0 %1618, %v497
    %v1620 = vpop.permute.xlu0 %1619
    %1622 = vset.pattern.permute.xlu0 3
    %1623 = vperm.xlu0 %1622, %v498
    %v1624 = vpop.permute.xlu0 %1623
    %1626 = vset.pattern.permute.xlu0 3
    %1627 = vperm.xlu0 %1626, %v499
    %v1628 = vpop.permute.xlu0 %1627
    %1630 = vset.pattern.permute.xlu0 3
    %1631 = vperm.xlu0 %1630, %v500
    %v1632 = vpop.permute.xlu0 %1631
    %1634 = vset.pattern.permute.xlu0 3
    %1635 = vperm.xlu0 %1634, %v501
    %v1636 = vpop.permute.xlu0 %1635
    %1638 = vset.pattern.permute.xlu0 3
    %1639 = vperm.xlu0 %1638, %v502
    %v1640 = vpop.permute.xlu0 %1639
    %1642 = vset.pattern.permute.xlu0 3
    %1643 = vperm.xlu0 %1642, %v503
    %v1644 = vpop.permute.xlu0 %1643
    %v1646 = vmul.f32 %v1486, %v1520
    %v1647 = vmul.f32 %v1487, %v1524
    %v1648 = vmul.f32 %v1488, %v1528
    %v1649 = vmul.f32 %v1489, %v1532
    %v1650 = vmul.f32 %v1490, %v1536
    %v1651 = vmul.f32 %v1491, %v1540
    %v1652 = vmul.f32 %v1492, %v1544
    %v1653 = vmul.f32 %v1493, %v1548
    %v1654 = vmul.f32 %v1494, %v1552
    %v1655 = vmul.f32 %v1495, %v1556
    %v1656 = vmul.f32 %v1496, %v1560
    %v1657 = vmul.f32 %v1497, %v1564
    %v1658 = vmul.f32 %v1498, %v1568
    %v1659 = vmul.f32 %v1499, %v1572
    %v1660 = vmul.f32 %v1500, %v1576
    %v1661 = vmul.f32 %v1501, %v1580
    %v1662 = vmul.f32 %v1502, %v1584
    %v1663 = vmul.f32 %v1503, %v1588
    %v1664 = vmul.f32 %v1504, %v1592
    %v1665 = vmul.f32 %v1505, %v1596
    %v1666 = vmul.f32 %v1506, %v1600
    %v1667 = vmul.f32 %v1507, %v1604
    %v1668 = vmul.f32 %v1508, %v1608
    %v1669 = vmul.f32 %v1509, %v1612
    %v1670 = vmul.f32 %v1510, %v1616
    %v1671 = vmul.f32 %v1511, %v1620
    %v1672 = vmul.f32 %v1512, %v1624
    %v1673 = vmul.f32 %v1513, %v1628
    %v1674 = vmul.f32 %v1514, %v1632
    %v1675 = vmul.f32 %v1515, %v1636
    %v1676 = vmul.f32 %v1516, %v1640
    %v1677 = vmul.f32 %v1517, %v1644
    %1710 = vrot.lane.b32.xlu0 %v1646, 96
    %v1711 = vpop.permute.xlu0 %1710
    %1712 = vrot.lane.b32.xlu0 %v1647, 96
    %v1713 = vpop.permute.xlu0 %1712
    %1714 = vrot.lane.b32.xlu0 %v1648, 96
    %v1715 = vpop.permute.xlu0 %1714
    %1716 = vrot.lane.b32.xlu0 %v1649, 96
    %v1717 = vpop.permute.xlu0 %1716
    %1718 = vrot.lane.b32.xlu0 %v1650, 96
    %v1719 = vpop.permute.xlu0 %1718
    %1720 = vrot.lane.b32.xlu0 %v1651, 96
    %v1721 = vpop.permute.xlu0 %1720
    %1722 = vrot.lane.b32.xlu0 %v1652, 96
    %v1723 = vpop.permute.xlu0 %1722
    %1724 = vrot.lane.b32.xlu0 %v1653, 96
    %v1725 = vpop.permute.xlu0 %1724
    %1726 = vrot.lane.b32.xlu0 %v1654, 96
    %v1727 = vpop.permute.xlu0 %1726
    %1728 = vrot.lane.b32.xlu0 %v1655, 96
    %v1729 = vpop.permute.xlu0 %1728
    %1730 = vrot.lane.b32.xlu0 %v1656, 96
    %v1731 = vpop.permute.xlu0 %1730
    %1732 = vrot.lane.b32.xlu0 %v1657, 96
    %v1733 = vpop.permute.xlu0 %1732
    %1734 = vrot.lane.b32.xlu0 %v1658, 96
    %v1735 = vpop.permute.xlu0 %1734
    %1736 = vrot.lane.b32.xlu0 %v1659, 96
    %v1737 = vpop.permute.xlu0 %1736
    %1738 = vrot.lane.b32.xlu0 %v1660, 96
    %v1739 = vpop.permute.xlu0 %1738
    %1740 = vrot.lane.b32.xlu0 %v1661, 96
    %v1741 = vpop.permute.xlu0 %1740
    %1742 = vrot.lane.b32.xlu0 %v1662, 96
    %v1743 = vpop.permute.xlu0 %1742
    %1744 = vrot.lane.b32.xlu0 %v1663, 96
    %v1745 = vpop.permute.xlu0 %1744
    %1746 = vrot.lane.b32.xlu0 %v1664, 96
    %v1747 = vpop.permute.xlu0 %1746
    %1748 = vrot.lane.b32.xlu0 %v1665, 96
    %v1749 = vpop.permute.xlu0 %1748
    %1750 = vrot.lane.b32.xlu0 %v1666, 96
    %v1751 = vpop.permute.xlu0 %1750
    %1752 = vrot.lane.b32.xlu0 %v1667, 96
    %v1753 = vpop.permute.xlu0 %1752
    %1754 = vrot.lane.b32.xlu0 %v1668, 96
    %v1755 = vpop.permute.xlu0 %1754
    %1756 = vrot.lane.b32.xlu0 %v1669, 96
    %v1757 = vpop.permute.xlu0 %1756
    %1758 = vrot.lane.b32.xlu0 %v1670, 96
    %v1759 = vpop.permute.xlu0 %1758
    %1760 = vrot.lane.b32.xlu0 %v1671, 96
    %v1761 = vpop.permute.xlu0 %1760
    %1762 = vrot.lane.b32.xlu0 %v1672, 96
    %v1763 = vpop.permute.xlu0 %1762
    %1764 = vrot.lane.b32.xlu0 %v1673, 96
    %v1765 = vpop.permute.xlu0 %1764
    %1766 = vrot.lane.b32.xlu0 %v1674, 96
    %v1767 = vpop.permute.xlu0 %1766
    %1768 = vrot.lane.b32.xlu0 %v1675, 96
    %v1769 = vpop.permute.xlu0 %1768
    %1770 = vrot.lane.b32.xlu0 %v1676, 96
    %v1771 = vpop.permute.xlu0 %1770
    %1772 = vrot.lane.b32.xlu0 %v1677, 96
    %v1773 = vpop.permute.xlu0 %1772
    %vm1806 = vcmask 1048320
    %1807 = vst.msk [vmem:[#allocation2] sm:$0xff] %vm1806, %v1711
    %1808 = vst.msk [vmem:[#allocation2 + $0x8] sm:$0xff] %vm1806, %v1713
    %1809 = vst.msk [vmem:[#allocation2 + $0x10] sm:$0xff] %vm1806, %v1715
    %1810 = vst.msk [vmem:[#allocation2 + $0x18] sm:$0xff] %vm1806, %v1717
    %1811 = vst.msk [vmem:[#allocation2 + $0x20] sm:$0xff] %vm1806, %v1719
    %1812 = vst.msk [vmem:[#allocation2 + $0x28] sm:$0xff] %vm1806, %v1721
    %1813 = vst.msk [vmem:[#allocation2 + $0x30] sm:$0xff] %vm1806, %v1723
    %1814 = vst.msk [vmem:[#allocation2 + $0x38] sm:$0xff] %vm1806, %v1725
    %1815 = vst.msk [vmem:[#allocation2 + $0x40] sm:$0xff] %vm1806, %v1727
    %1816 = vst.msk [vmem:[#allocation2 + $0x48] sm:$0xff] %vm1806, %v1729
    %1817 = vst.msk [vmem:[#allocation2 + $0x50] sm:$0xff] %vm1806, %v1731
    %1818 = vst.msk [vmem:[#allocation2 + $0x58] sm:$0xff] %vm1806, %v1733
    %1819 = vst.msk [vmem:[#allocation2 + $0x60] sm:$0xff] %vm1806, %v1735
    %1820 = vst.msk [vmem:[#allocation2 + $0x68] sm:$0xff] %vm1806, %v1737
    %1821 = vst.msk [vmem:[#allocation2 + $0x70] sm:$0xff] %vm1806, %v1739
    %1822 = vst.msk [vmem:[#allocation2 + $0x78] sm:$0xff] %vm1806, %v1741
    %1823 = vst.msk [vmem:[#allocation2 + $0x80] sm:$0xff] %vm1806, %v1743
    %1824 = vst.msk [vmem:[#allocation2 + $0x88] sm:$0xff] %vm1806, %v1745
    %1825 = vst.msk [vmem:[#allocation2 + $0x90] sm:$0xff] %vm1806, %v1747
    %1826 = vst.msk [vmem:[#allocation2 + $0x98] sm:$0xff] %vm1806, %v1749
    %1827 = vst.msk [vmem:[#allocation2 + $0xa0] sm:$0xff] %vm1806, %v1751
    %1828 = vst.msk [vmem:[#allocation2 + $0xa8] sm:$0xff] %vm1806, %v1753
    %1829 = vst.msk [vmem:[#allocation2 + $0xb0] sm:$0xff] %vm1806, %v1755
    %1830 = vst.msk [vmem:[#allocation2 + $0xb8] sm:$0xff] %vm1806, %v1757
    %1831 = vst.msk [vmem:[#allocation2 + $0xc0] sm:$0xff] %vm1806, %v1759
    %1832 = vst.msk [vmem:[#allocation2 + $0xc8] sm:$0xff] %vm1806, %v1761
    %1833 = vst.msk [vmem:[#allocation2 + $0xd0] sm:$0xff] %vm1806, %v1763
    %1834 = vst.msk [vmem:[#allocation2 + $0xd8] sm:$0xff] %vm1806, %v1765
    %1835 = vst.msk [vmem:[#allocation2 + $0xe0] sm:$0xff] %vm1806, %v1767
    %1836 = vst.msk [vmem:[#allocation2 + $0xe8] sm:$0xff] %vm1806, %v1769
    %1837 = vst.msk [vmem:[#allocation2 + $0xf0] sm:$0xff] %vm1806, %v1771
    %1838 = vst.msk [vmem:[#allocation2 + $0xf8] sm:$0xff] %vm1806, %v1773
    %v1839 = vld [vmem:[%s2] sm:$0xff]
    %v1840 = vld [vmem:[%s2 + $0x8] sm:$0xff]
    %v1841 = vld [vmem:[%s2 + $0x10] sm:$0xff]
    %v1842 = vld [vmem:[%s2 + $0x18] sm:$0xff]
    %v1844 = vsel %vm83, %v17, 0
    %v1847 = vsel %vm83, %v18, 0
    %v1850 = vsel %vm83, %v19, 0
    %v1853 = vsel %vm83, %v20, 0
    %v1856 = vsel %vm83, %v21, 0
    %v1859 = vsel %vm83, %v22, 0
    %v1862 = vsel %vm83, %v23, 0
    %v1865 = vsel %vm83, %v24, 0
    %v1868 = vsel %vm83, %v25, 0
    %v1871 = vsel %vm83, %v26, 0
    %v1874 = vsel %vm83, %v27, 0
    %v1877 = vsel %vm83, %v28, 0
    %v1880 = vsel %vm83, %v29, 0
    %v1883 = vsel %vm83, %v30, 0
    %v1886 = vsel %vm83, %v31, 0
    %v1889 = vsel %vm83, %v32, 0
    %v1892 = vsel %vm83, %v33, 0
    %v1895 = vsel %vm83, %v34, 0
    %v1898 = vsel %vm83, %v35, 0
    %v1901 = vsel %vm83, %v36, 0
    %v1904 = vsel %vm83, %v37, 0
    %v1907 = vsel %vm83, %v38, 0
    %v1910 = vsel %vm83, %v39, 0
    %v1913 = vsel %vm83, %v40, 0
    %v1916 = vsel %vm83, %v41, 0
    %v1919 = vsel %vm83, %v42, 0
    %v1922 = vsel %vm83, %v43, 0
    %v1925 = vsel %vm83, %v44, 0
    %v1928 = vsel %vm83, %v45, 0
    %v1931 = vsel %vm83, %v46, 0
    %v1934 = vsel %vm83, %v47, 0
    %v1937 = vsel %vm83, %v48, 0
    %1939 = vmatprep.subr.mxu0 0.0
    %1940 = vmatpush1.msra.mxu0 %v1839
    %1941 = vmatprep.subr.mxu0 0.0
    %1942 = vmatpush1.msra.mxu0 %v1840
    %1943 = vmatprep.subr.mxu0 0.0
    %1944 = vmatpush1.msra.mxu0 %v1841
    %1945 = vmatprep.subr.mxu0 0.0
    %1946 = vmatpush1.msra.mxu0 %v1842
    %1947 = vmatprep.subr.mxu0 0.0
    %1948 = vmatpush1.msra.mxu0 0.0
    %1949 = vmatprep.subr.mxu0 0.0
    %1950 = vmatpush1.msra.mxu0 0.0
    %1951 = vmatprep.subr.mxu0 0.0
    %1952 = vmatpush1.msra.mxu0 0.0
    %1953 = vmatprep.subr.mxu0 0.0
    %1954 = vmatpush1.msra.mxu0 0.0
    %1955 = vmatprep.subr.mxu0 0.0
    %1956 = vmatpush1.msra.mxu0 0.0
    %1957 = vmatprep.subr.mxu0 0.0
    %1958 = vmatpush1.msra.mxu0 0.0
    %1959 = vmatprep.subr.mxu0 0.0
    %1960 = vmatpush1.msra.mxu0 0.0
    %1961 = vmatprep.subr.mxu0 0.0
    %1962 = vmatpush1.msra.mxu0 0.0
    %1963 = vmatprep.subr.mxu0 0.0
    %1964 = vmatpush1.msra.mxu0 0.0
    %1965 = vmatprep.subr.mxu0 0.0
    %1966 = vmatpush1.msra.mxu0 0.0
    %1967 = vmatprep.subr.mxu0 0.0
    %1968 = vmatpush1.msra.mxu0 0.0
    %1969 = vmatprep.subr.mxu0 0.0
    %1970 = vmatpush1.msra.mxu0 0.0
    %1971 = vmatprep.subr.mxu0 0.0
    %1972 = vmatpush1.msra.mxu0 0.0
    %1973 = vmatprep.subr.mxu0 0.0
    %1974 = vmatpush1.msra.mxu0 0.0
    %1975 = vmatprep.subr.mxu0 0.0
    %1976 = vmatpush1.msra.mxu0 0.0
    %1977 = vmatprep.subr.mxu0 0.0
    %1978 = vmatpush1.msra.mxu0 0.0
    %1979 = vmatprep.subr.mxu0 0.0
    %1980 = vmatpush1.msra.mxu0 0.0
    %1981 = vmatprep.subr.mxu0 0.0
    %1982 = vmatpush1.msra.mxu0 0.0
    %1983 = vmatprep.subr.mxu0 0.0
    %1984 = vmatpush1.msra.mxu0 0.0
    %1985 = vmatprep.subr.mxu0 0.0
    %1986 = vmatpush1.msra.mxu0 0.0
    %1987 = vmatprep.subr.mxu0 0.0
    %1988 = vmatpush1.msra.mxu0 0.0
    %1989 = vmatprep.subr.mxu0 0.0
    %1990 = vmatpush1.msra.mxu0 0.0
    %1991 = vmatprep.subr.mxu0 0.0
    %1992 = vmatpush1.msra.mxu0 0.0
    %1993 = vmatprep.subr.mxu0 0.0
    %1994 = vmatpush1.msra.mxu0 0.0
    %1995 = vmatprep.subr.mxu0 0.0
    %1996 = vmatpush1.msra.mxu0 0.0
    %1997 = vmatprep.subr.mxu0 0.0
    %1998 = vmatpush1.msra.mxu0 0.0
    %1999 = vmatprep.subr.mxu0 0.0
    %2000 = vmatpush1.msra.mxu0 0.0
    %2001 = vmatprep.subr.mxu0 0.0
    %2002 = vmatpush1.msra.mxu0 0.0
    %2003 = vmatprep.mubr.f32.mxu0 0.0
    %2004 = vmatmul.mubr.f32.gmra.mrb[0].mxu0 %v1844
    %v2005 = vpop.f32.mrb[0].mxu0
    %v2006 = vadd.f32 0.0, %v2005
    %v2007 = vpop.f32.mrb[0].mxu0
    %2008 = vmatprep.mubr.f32.mxu0 0.0
    %2009 = vmatmul.mubr.f32.gmra.mrb[0].mxu0 %v1847
    %v2010 = vpop.f32.mrb[0].mxu0
    %v2011 = vadd.f32 0.0, %v2010
    %v2012 = vpop.f32.mrb[0].mxu0
    %2013 = vmatprep.mubr.f32.mxu0 0.0
    %2014 = vmatmul.mubr.f32.gmra.mrb[0].mxu0 %v1850
    %v2015 = vpop.f32.mrb[0].mxu0
    %v2016 = vadd.f32 0.0, %v2015
    %v2017 = vpop.f32.mrb[0].mxu0
    %2018 = vmatprep.mubr.f32.mxu0 0.0
    %2019 = vmatmul.mubr.f32.gmra.mrb[0].mxu0 %v1853
    %v2020 = vpop.f32.mrb[0].mxu0
    %v2021 = vadd.f32 0.0, %v2020
    %v2022 = vpop.f32.mrb[0].mxu0
    %2023 = vmatprep.mubr.f32.mxu0 0.0
    %2024 = vmatmul.mubr.f32.gmra.mrb[0].mxu0 %v1856
    %v2025 = vpop.f32.mrb[0].mxu0
    %v2026 = vadd.f32 0.0, %v2025
    %v2027 = vpop.f32.mrb[0].mxu0
    %2028 = vmatprep.mubr.f32.mxu0 0.0
    %2029 = vmatmul.mubr.f32.gmra.mrb[0].mxu0 %v1859
    %v2030 = vpop.f32.mrb[0].mxu0
    %v2031 = vadd.f32 0.0, %v2030
    %v2032 = vpop.f32.mrb[0].mxu0
    %2033 = vmatprep.mubr.f32.mxu0 0.0
    %2034 = vmatmul.mubr.f32.gmra.mrb[0].mxu0 %v1862
    %v2035 = vpop.f32.mrb[0].mxu0
    %v2036 = vadd.f32 0.0, %v2035
    %v2037 = vpop.f32.mrb[0].mxu0
    %2038 = vmatprep.mubr.f32.mxu0 0.0
    %2039 = vmatmul.mubr.f32.gmra.mrb[0].mxu0 %v1865
    %v2040 = vpop.f32.mrb[0].mxu0
    %v2041 = vadd.f32 0.0, %v2040
    %v2042 = vpop.f32.mrb[0].mxu0
    %2043 = vmatprep.mubr.f32.mxu0 0.0
    %2044 = vmatmul.mubr.f32.gmra.mrb[0].mxu0 %v1868
    %v2045 = vpop.f32.mrb[0].mxu0
    %v2046 = vadd.f32 0.0, %v2045
    %v2047 = vpop.f32.mrb[0].mxu0
    %2048 = vmatprep.mubr.f32.mxu0 0.0
    %2049 = vmatmul.mubr.f32.gmra.mrb[0].mxu0 %v1871
    %v2050 = vpop.f32.mrb[0].mxu0
    %v2051 = vadd.f32 0.0, %v2050
    %v2052 = vpop.f32.mrb[0].mxu0
    %2053 = vmatprep.mubr.f32.mxu0 0.0
    %2054 = vmatmul.mubr.f32.gmra.mrb[0].mxu0 %v1874
    %v2055 = vpop.f32.mrb[0].mxu0
    %v2056 = vadd.f32 0.0, %v2055
    %v2057 = vpop.f32.mrb[0].mxu0
    %2058 = vmatprep.mubr.f32.mxu0 0.0
    %2059 = vmatmul.mubr.f32.gmra.mrb[0].mxu0 %v1877
    %v2060 = vpop.f32.mrb[0].mxu0
    %v2061 = vadd.f32 0.0, %v2060
    %v2062 = vpop.f32.mrb[0].mxu0
    %2063 = vmatprep.mubr.f32.mxu0 0.0
    %2064 = vmatmul.mubr.f32.gmra.mrb[0].mxu0 %v1880
    %v2065 = vpop.f32.mrb[0].mxu0
    %v2066 = vadd.f32 0.0, %v2065
    %v2067 = vpop.f32.mrb[0].mxu0
    %2068 = vmatprep.mubr.f32.mxu0 0.0
    %2069 = vmatmul.mubr.f32.gmra.mrb[0].mxu0 %v1883
    %v2070 = vpop.f32.mrb[0].mxu0
    %v2071 = vadd.f32 0.0, %v2070
    %v2072 = vpop.f32.mrb[0].mxu0
    %2073 = vmatprep.mubr.f32.mxu0 0.0
    %2074 = vmatmul.mubr.f32.gmra.mrb[0].mxu0 %v1886
    %v2075 = vpop.f32.mrb[0].mxu0
    %v2076 = vadd.f32 0.0, %v2075
    %v2077 = vpop.f32.mrb[0].mxu0
    %2078 = vmatprep.mubr.f32.mxu0 0.0
    %2079 = vmatmul.mubr.f32.gmra.mrb[0].mxu0 %v1889
    %v2080 = vpop.f32.mrb[0].mxu0
    %v2081 = vadd.f32 0.0, %v2080
    %v2082 = vpop.f32.mrb[0].mxu0
    %2083 = vmatprep.mubr.f32.mxu0 0.0
    %2084 = vmatmul.mubr.f32.gmra.mrb[0].mxu0 %v1892
    %v2085 = vpop.f32.mrb[0].mxu0
    %v2086 = vadd.f32 0.0, %v2085
    %v2087 = vpop.f32.mrb[0].mxu0
    %2088 = vmatprep.mubr.f32.mxu0 0.0
    %2089 = vmatmul.mubr.f32.gmra.mrb[0].mxu0 %v1895
    %v2090 = vpop.f32.mrb[0].mxu0
    %v2091 = vadd.f32 0.0, %v2090
    %v2092 = vpop.f32.mrb[0].mxu0
    %2093 = vmatprep.mubr.f32.mxu0 0.0
    %2094 = vmatmul.mubr.f32.gmra.mrb[0].mxu0 %v1898
    %v2095 = vpop.f32.mrb[0].mxu0
    %v2096 = vadd.f32 0.0, %v2095
    %v2097 = vpop.f32.mrb[0].mxu0
    %2098 = vmatprep.mubr.f32.mxu0 0.0
    %2099 = vmatmul.mubr.f32.gmra.mrb[0].mxu0 %v1901
    %v2100 = vpop.f32.mrb[0].mxu0
    %v2101 = vadd.f32 0.0, %v2100
    %v2102 = vpop.f32.mrb[0].mxu0
    %2103 = vmatprep.mubr.f32.mxu0 0.0
    %2104 = vmatmul.mubr.f32.gmra.mrb[0].mxu0 %v1904
    %v2105 = vpop.f32.mrb[0].mxu0
    %v2106 = vadd.f32 0.0, %v2105
    %v2107 = vpop.f32.mrb[0].mxu0
    %2108 = vmatprep.mubr.f32.mxu0 0.0
    %2109 = vmatmul.mubr.f32.gmra.mrb[0].mxu0 %v1907
    %v2110 = vpop.f32.mrb[0].mxu0
    %v2111 = vadd.f32 0.0, %v2110
    %v2112 = vpop.f32.mrb[0].mxu0
    %2113 = vmatprep.mubr.f32.mxu0 0.0
    %2114 = vmatmul.mubr.f32.gmra.mrb[0].mxu0 %v1910
    %v2115 = vpop.f32.mrb[0].mxu0
    %v2116 = vadd.f32 0.0, %v2115
    %v2117 = vpop.f32.mrb[0].mxu0
    %2118 = vmatprep.mubr.f32.mxu0 0.0
    %2119 = vmatmul.mubr.f32.gmra.mrb[0].mxu0 %v1913
    %v2120 = vpop.f32.mrb[0].mxu0
    %v2121 = vadd.f32 0.0, %v2120
    %v2122 = vpop.f32.mrb[0].mxu0
    %2123 = vmatprep.mubr.f32.mxu0 0.0
    %2124 = vmatmul.mubr.f32.gmra.mrb[0].mxu0 %v1916
    %v2125 = vpop.f32.mrb[0].mxu0
    %v2126 = vadd.f32 0.0, %v2125
    %v2127 = vpop.f32.mrb[0].mxu0
    %2128 = vmatprep.mubr.f32.mxu0 0.0
    %2129 = vmatmul.mubr.f32.gmra.mrb[0].mxu0 %v1919
    %v2130 = vpop.f32.mrb[0].mxu0
    %v2131 = vadd.f32 0.0, %v2130
    %v2132 = vpop.f32.mrb[0].mxu0
    %2133 = vmatprep.mubr.f32.mxu0 0.0
    %2134 = vmatmul.mubr.f32.gmra.mrb[0].mxu0 %v1922
    %v2135 = vpop.f32.mrb[0].mxu0
    %v2136 = vadd.f32 0.0, %v2135
    %v2137 = vpop.f32.mrb[0].mxu0
    %2138 = vmatprep.mubr.f32.mxu0 0.0
    %2139 = vmatmul.mubr.f32.gmra.mrb[0].mxu0 %v1925
    %v2140 = vpop.f32.mrb[0].mxu0
    %v2141 = vadd.f32 0.0, %v2140
    %v2142 = vpop.f32.mrb[0].mxu0
    %2143 = vmatprep.mubr.f32.mxu0 0.0
    %2144 = vmatmul.mubr.f32.gmra.mrb[0].mxu0 %v1928
    %v2145 = vpop.f32.mrb[0].mxu0
    %v2146 = vadd.f32 0.0, %v2145
    %v2147 = vpop.f32.mrb[0].mxu0
    %2148 = vmatprep.mubr.f32.mxu0 0.0
    %2149 = vmatmul.mubr.f32.gmra.mrb[0].mxu0 %v1931
    %v2150 = vpop.f32.mrb[0].mxu0
    %v2151 = vadd.f32 0.0, %v2150
    %v2152 = vpop.f32.mrb[0].mxu0
    %2153 = vmatprep.mubr.f32.mxu0 0.0
    %2154 = vmatmul.mubr.f32.gmra.mrb[0].mxu0 %v1934
    %v2155 = vpop.f32.mrb[0].mxu0
    %v2156 = vadd.f32 0.0, %v2155
    %v2157 = vpop.f32.mrb[0].mxu0
    %2158 = vmatprep.mubr.f32.mxu0 0.0
    %2159 = vmatmul.mubr.f32.gmra.mrb[0].mxu0 %v1937
    %v2160 = vpop.f32.mrb[0].mxu0
    %v2161 = vadd.f32 0.0, %v2160
    %v2162 = vpop.f32.mrb[0].mxu0
    %2163 = vdwg.mxu0
    %2164 = vst.msk [vmem:[%s4] sm:$0xff] %vm83, %v2006
    %2165 = vst.msk [vmem:[%s4 + $0x8] sm:$0xff] %vm83, %v2011
    %2166 = vst.msk [vmem:[%s4 + $0x10] sm:$0xff] %vm83, %v2016
    %2167 = vst.msk [vmem:[%s4 + $0x18] sm:$0xff] %vm83, %v2021
    %2168 = vst.msk [vmem:[%s4 + $0x20] sm:$0xff] %vm83, %v2026
    %2169 = vst.msk [vmem:[%s4 + $0x28] sm:$0xff] %vm83, %v2031
    %2170 = vst.msk [vmem:[%s4 + $0x30] sm:$0xff] %vm83, %v2036
    %2171 = vst.msk [vmem:[%s4 + $0x38] sm:$0xff] %vm83, %v2041
    %2172 = vst.msk [vmem:[%s4 + $0x40] sm:$0xff] %vm83, %v2046
    %2173 = vst.msk [vmem:[%s4 + $0x48] sm:$0xff] %vm83, %v2051
    %2174 = vst.msk [vmem:[%s4 + $0x50] sm:$0xff] %vm83, %v2056
    %2175 = vst.msk [vmem:[%s4 + $0x58] sm:$0xff] %vm83, %v2061
    %2176 = vst.msk [vmem:[%s4 + $0x60] sm:$0xff] %vm83, %v2066
    %2177 = vst.msk [vmem:[%s4 + $0x68] sm:$0xff] %vm83, %v2071
    %2178 = vst.msk [vmem:[%s4 + $0x70] sm:$0xff] %vm83, %v2076
    %2179 = vst.msk [vmem:[%s4 + $0x78] sm:$0xff] %vm83, %v2081
    %2180 = vst.msk [vmem:[%s4 + $0x80] sm:$0xff] %vm83, %v2086
    %2181 = vst.msk [vmem:[%s4 + $0x88] sm:$0xff] %vm83, %v2091
    %2182 = vst.msk [vmem:[%s4 + $0x90] sm:$0xff] %vm83, %v2096
    %2183 = vst.msk [vmem:[%s4 + $0x98] sm:$0xff] %vm83, %v2101
    %2184 = vst.msk [vmem:[%s4 + $0xa0] sm:$0xff] %vm83, %v2106
    %2185 = vst.msk [vmem:[%s4 + $0xa8] sm:$0xff] %vm83, %v2111
    %2186 = vst.msk [vmem:[%s4 + $0xb0] sm:$0xff] %vm83, %v2116
    %2187 = vst.msk [vmem:[%s4 + $0xb8] sm:$0xff] %vm83, %v2121
    %2188 = vst.msk [vmem:[%s4 + $0xc0] sm:$0xff] %vm83, %v2126
    %2189 = vst.msk [vmem:[%s4 + $0xc8] sm:$0xff] %vm83, %v2131
    %2190 = vst.msk [vmem:[%s4 + $0xd0] sm:$0xff] %vm83, %v2136
    %2191 = vst.msk [vmem:[%s4 + $0xd8] sm:$0xff] %vm83, %v2141
    %2192 = vst.msk [vmem:[%s4 + $0xe0] sm:$0xff] %vm83, %v2146
    %2193 = vst.msk [vmem:[%s4 + $0xe8] sm:$0xff] %vm83, %v2151
    %2194 = vst.msk [vmem:[%s4 + $0xf0] sm:$0xff] %vm83, %v2156
    %2195 = vst.msk [vmem:[%s4 + $0xf8] sm:$0xff] %vm83, %v2161
    // Predicated region
    $region14: #{tpu_custom_call.1} parent=1 // pred_check
      _
    $region15: #{tpu_custom_call.1} parent=1 // pred_check_branch
      %2197 = sbr.rel (0) target = $region17
    $region16: #{tpu_custom_call.1} parent=1 // pred_region
      %s2199 = ssub.s32 4096, 4096
      %2200 = vsyncadd [#allocation3], %s2199
      %s2201 = sshll.u32 [#allocation2], 4
      %s2202 = int_to_ptr.vmem [resolvable:$true] %s2201
      %2207 = dma.vmem_to_hbm [thread:$0]  %s2202, 4096, %s3, [#allocation3], 128, 128, 8
    $region17: #{tpu_custom_call.1} parent=1 // pred_fallthru
      _
    // Predicated region
    $region18: #{tpu_custom_call.1} parent=1 // pred_check
      _
    $region19: #{tpu_custom_call.1} parent=1 // pred_check_branch
      %2209 = sbr.rel (0) target = $region21
    $region20: #{tpu_custom_call.1} parent=1 // pred_region
      _
    $region21: #{tpu_custom_call.1} parent=1 // pred_fallthru
      _
    // Predicated region
    $region22: #{tpu_custom_call.1} parent=1 // pred_check
      _
    $region23: #{tpu_custom_call.1} parent=1 // pred_check_branch
      %2211 = sbr.rel (0) target = $region25
    $region24: #{tpu_custom_call.1} parent=1 // pred_region
      %2212 = dma.done [#allocation3], 4096
    $region25: #{tpu_custom_call.1} parent=1 // pred_fallthru
      _
    // Predicated region
    $region26: #{tpu_custom_call.1} parent=1 // pred_check
      _
    $region27: #{tpu_custom_call.1} parent=1 // pred_check_branch
      %2214 = sbr.rel (0) target = $region29
    $region28: #{tpu_custom_call.1} parent=1 // pred_region
      _
    $region29: #{tpu_custom_call.1} parent=1 // pred_fallthru
      _
    %2215 = vsyncpa [#allocation3], 1

</llo_original>
